<compile_context>
chip_gen: v7x
topology: tpu7x:2x2x1
jax: 0.10.0
libtpu: 0.0.40
codegen_flags: <defaults>
</compile_context>

<pallas_src>
import functools

import jax
import jax.numpy as jnp
from jax.experimental import pallas as pl
from jax.experimental.pallas import tpu as pltpu


# ----------------------------- model hyper-params ----------------------------- #
INPUT_DIM = 64        # flattened input size (Din)
HIDDEN_DIM_DEC = 32   # decoder hidden before adding z_dim
Z_DIM = 8             # latent dim (Dout of encoder)
ENC_H1 = 500          # encoder fixed hidden sizes (rotations=False, scaling=False branch)
ENC_H2 = 200
DEC_IN = INPUT_DIM + Z_DIM            # decoder input  = input_dim + z_dim
DEC_H = HIDDEN_DIM_DEC + Z_DIM        # decoder hidden = hidden_dim_dec + z_dim
DEC_LAYERS = 3                        # rotations=False -> 3 repeated linear2+relu layers
OUT_W = 128                           # lane-dense packed output width
PAD_W = OUT_W - (INPUT_DIM + 4 * Z_DIM)   # 32 padding lanes


def _round_up(x, m):
    return ((x + m - 1) // m) * m


# --------------------------------- Pallas kernel ------------------------------ #
def _tdcvae_kernel(
    # batch-tiled stacked input: rows [0:TB)=x_t tile, [TB:2TB)=x_next tile (bf16)
    xx_ref,
    # encoder params (shared for x_t and x_next); mu/logsigma heads fused into wh/bh
    we1_ref, be1_ref, we2_ref, be2_ref, wh_ref, bh_ref,
    # decoder params; wd1 split into x-part and z-part
    wd1x_ref, wd1z_ref, bd1_ref, wd2_ref, bd2_ref, wd3_ref, bd3_ref,
    # reparameterization noise (f32)
    eps_ref,
    # packed output
    out_ref,
):
    tb = xx_ref.shape[0] // 2
    xx = xx_ref[...]                               # (2*TB, Din), bf16

    # ---- single stacked encoder pass (bf16 operands, f32 accumulation) ----
    h = jnp.dot(xx, we1_ref[...], preferred_element_type=jnp.float32) + be1_ref[...]
    h = jnp.maximum(h, 0.0).astype(jnp.bfloat16)
    h = jnp.dot(h, we2_ref[...], preferred_element_type=jnp.float32) + be2_ref[...]
    h = jnp.maximum(h, 0.0).astype(jnp.bfloat16)
    # fused mean / logsigma head -> (2*TB, 2*Z_DIM), f32
    ml = jnp.dot(h, wh_ref[...], preferred_element_type=jnp.float32) + bh_ref[...]

    mu_t = ml[:tb, 0:Z_DIM]
    mu_n = ml[tb:, 0:Z_DIM]
    lv_t = ml[:tb, Z_DIM:2 * Z_DIM]
    lv_n = ml[tb:, Z_DIM:2 * Z_DIM]

    # ---- z representation (stable log(exp(a)+exp(b))), all f32 ----
    mu_z = mu_n - mu_t
    m = jnp.maximum(lv_n, lv_t)
    logvar_z = m + jnp.log(1.0 + jnp.exp(-jnp.abs(lv_n - lv_t)))
    z_t = mu_z + jnp.exp(0.5 * logvar_z) * eps_ref[...]

    # ---- decoder p(x_{t+1} | x_t, z_t): concat replaced by split-weight matmuls ----
    x_t_b = xx[:tb]                                # (TB, Din), bf16
    hd = (jnp.dot(x_t_b, wd1x_ref[...], preferred_element_type=jnp.float32)
          + jnp.dot(z_t.astype(jnp.bfloat16), wd1z_ref[...],
                    preferred_element_type=jnp.float32)
          + bd1_ref[...])
    hd = jnp.maximum(hd, 0.0).astype(jnp.bfloat16)

    wd2 = wd2_ref[...]                                       # hoisted out of the loop
    bd2 = jnp.broadcast_to(bd2_ref[...], (tb, DEC_H))        # broadcast once, reuse
    for _ in range(DEC_LAYERS):
        hd = jnp.dot(hd, wd2, preferred_element_type=jnp.float32) + bd2
        hd = jnp.maximum(hd, 0.0).astype(jnp.bfloat16)
    logits = jnp.dot(hd, wd3_ref[...], preferred_element_type=jnp.float32) + bd3_ref[...]
    x_dec = jax.nn.sigmoid(logits)                 # rotations/scaling False -> sigmoid output

    # ---- single lane-dense (TB, 128) output slab: one unmasked writeback ----
    pad = jnp.zeros((tb, PAD_W), jnp.float32)
    out_ref[...] = jnp.concatenate([x_dec, mu_z, logvar_z, z_t, mu_t, pad], axis=-1)


# --------------------------------- wrapper ------------------------------------ #
@functools.partial(jax.jit, static_argnames=("tile_b",))
def td_cvae_forward(x_t, x_next, eps, params, tile_b=512):
    (we1, be1, we2, be2, wm, bm, wls, bls,
     wd1, bd1, wd2, bd2, wd3, bd3) = params

    # fuse mean/logsigma heads; split decoder linear1 into (x | z) parts; bf16 matmul weights
    wh = jnp.concatenate([wm, wls], axis=1)       # (ENC_H2, 2*Z_DIM)
    bh = jnp.concatenate([bm, bls], axis=1)       # (1, 2*Z_DIM)
    wd1x = wd1[:INPUT_DIM]                        # (INPUT_DIM, DEC_H)
    wd1z = wd1[INPUT_DIM:]                        # (Z_DIM, DEC_H)

    bf = lambda w: w.astype(jnp.bfloat16)
    weights = (bf(we1), be1, bf(we2), be2, bf(wh), bh,
               bf(wd1x), bf(wd1z), bd1, bf(wd2), bd2, bf(wd3), bd3)

    B = x_t.shape[0]
    B8 = _round_up(B, 8)
    TB = min(tile_b, B8)
    if B8 >= 16:  # keep >= 2 grid steps: shards the parallel axis across both v7x TCs, low padding
        TB = min(TB, _round_up((B8 + 1) // 2, 8))
    TB = _round_up(TB, 8)
    Bp = _round_up(B8, TB)
    nb = Bp // TB

    def pad_rows(a):
        return jnp.pad(a, ((0, Bp - B), (0, 0))) if Bp != B else a

    # Tile-interleaved row stacking done once in the wrapper: block i of the kernel reads the
    # contiguous rows [x_t tile i ; x_next tile i]  ->  no in-kernel concat / reshape.
    xt3 = pad_rows(x_t).reshape(nb, TB, INPUT_DIM)
    xn3 = pad_rows(x_next).reshape(nb, TB, INPUT_DIM)
    xs = jnp.stack([xt3, xn3], axis=1).reshape(2 * Bp, INPUT_DIM).astype(jnp.bfloat16)
    eps_p = pad_rows(eps)

    enc_flops = 2 * (2 * Bp) * (INPUT_DIM * ENC_H1 + ENC_H1 * ENC_H2 + ENC_H2 * 2 * Z_DIM)
    dec_flops = 2 * Bp * (INPUT_DIM * DEC_H + Z_DIM * DEC_H
                          + DEC_LAYERS * DEC_H * DEC_H + DEC_H * INPUT_DIM)
    w_bytes = sum(int(a.size) * a.dtype.itemsize for a in weights)
    cost = pl.CostEstimate(
        flops=enc_flops + dec_flops,
        transcendentals=Bp * (4 * Z_DIM + INPUT_DIM),
        bytes_accessed=int(xs.size) * 2 + int(eps_p.size) * 4 + Bp * OUT_W * 4 + w_bytes,
    )

    def w_spec(w):
        return pl.BlockSpec(w.shape, lambda i: (0, 0))   # resident across grid steps

    out = pl.pallas_call(
        _tdcvae_kernel,
        out_shape=jax.ShapeDtypeStruct((Bp, OUT_W), jnp.float32),
        grid=(nb,),
        in_specs=[pl.BlockSpec((2 * TB, INPUT_DIM), lambda i: (i, 0))]
                 + [w_spec(w) for w in weights]
                 + [pl.BlockSpec((TB, Z_DIM), lambda i: (i, 0))],
        out_specs=pl.BlockSpec((TB, OUT_W), lambda i: (i, 0)),
        compiler_params=pltpu.CompilerParams(
            dimension_semantics=("parallel",)),
        cost_estimate=cost,
    )(xs, *weights, eps_p)

    x_dec = out[:B, 0:INPUT_DIM]
    mu_z = out[:B, INPUT_DIM:INPUT_DIM + Z_DIM]
    logvar_z = out[:B, INPUT_DIM + Z_DIM:INPUT_DIM + 2 * Z_DIM]
    z_t = out[:B, INPUT_DIM + 2 * Z_DIM:INPUT_DIM + 3 * Z_DIM]
    mu_x_t = out[:B, INPUT_DIM + 3 * Z_DIM:INPUT_DIM + 4 * Z_DIM]

    # forward returns (x_dec, x_next, mu_z, logvar_z, z_t, mu_x_t)
    return x_dec, x_next, mu_z, logvar_z, z_t, mu_x_t


# ------------------------- deterministic param init ---------------------------- #
def _linear_params(key, fan_in, fan_out):
    """PyTorch nn.Linear-style uniform init; weight stored as (in, out)."""
    kw, kb = jax.random.split(key)
    bound = 1.0 / jnp.sqrt(jnp.float32(fan_in))
    w = jax.random.uniform(kw, (fan_in, fan_out), jnp.float32, -bound, bound)
    b = jax.random.uniform(kb, (1, fan_out), jnp.float32, -bound, bound)
    return w, b


def init_params(key):
    keys = jax.random.split(key, 8)
    # encoder (rotations=False, scaling=False branch)
    we1, be1 = _linear_params(keys[0], INPUT_DIM, ENC_H1)
    we2, be2 = _linear_params(keys[1], ENC_H1, ENC_H2)
    wm, bm = _linear_params(keys[2], ENC_H2, Z_DIM)
    wls, bls = _linear_params(keys[3], ENC_H2, Z_DIM)
    # decoder
    wd1, bd1 = _linear_params(keys[4], DEC_IN, DEC_H)
    wd2, bd2 = _linear_params(keys[5], DEC_H, DEC_H)
    wd3, bd3 = _linear_params(keys[6], DEC_H, INPUT_DIM)
    return (we1, be1, we2, be2, wm, bm, wls, bls,
            wd1, bd1, wd2, bd2, wd3, bd3)


# ------------------------------ pure-JAX reference ------------------------------ #
def _reference(x_t, x_next, eps, params, matmul_dtype=jnp.float32):
    """matmul_dtype=bfloat16 reproduces the kernel's precision (bf16 operands, f32 accumulate)."""
    (we1, be1, we2, be2, wm, bm, wls, bls,
     wd1, bd1, wd2, bd2, wd3, bd3) = params

    def mm(a, b):
        return jnp.dot(a.astype(matmul_dtype), b.astype(matmul_dtype),
                       preferred_element_type=jnp.float32)

    def encode(x):
        h = jax.nn.relu(mm(x, we1) + be1)
        h = jax.nn.relu(mm(h, we2) + be2)
        return mm(h, wm) + bm, mm(h, wls) + bls

    mu_t, lv_t = encode(x_t)
    mu_n, lv_n = encode(x_next)
    mu_z = mu_n - mu_t
    logvar_z = jnp.logaddexp(lv_n, lv_t)          # == log(exp(a)+exp(b)), stable
    z = mu_z + jnp.exp(0.5 * logvar_z) * eps
    xz = jnp.concatenate([x_t, z], axis=-1)
    h = jax.nn.relu(mm(xz, wd1) + bd1)
    for _ in range(DEC_LAYERS):
        h = jax.nn.relu(mm(h, wd2) + bd2)
    x_dec = jax.nn.sigmoid(mm(h, wd3) + bd3)
    return x_dec, mu_z, logvar_z, z, mu_t


# ----------------------------------- main --------------------------------------- #
if __name__ == "__main__":
    key = jax.random.PRNGKey(0)
    k_par, k_xt, k_xn, k_eps = jax.random.split(key, 4)

    params = init_params(k_par)

    B = 16
    # images are flattened before entering this MLP VAE; feed flattened vectors in [0,1)
    x_t = jax.random.uniform(k_xt, (B, INPUT_DIM), jnp.float32)
    x_next = jax.random.uniform(k_xn, (B, INPUT_DIM), jnp.float32)
    # eps for the reparameterization trick (torch.randn_like) is sampled outside the kernel
    eps = jax.random.normal(k_eps, (B, Z_DIM), jnp.float32)

    # default tile_b=512 clamps to TB=8 here -> exercises a 2-step batch grid
    outs = td_cvae_forward(x_t, x_next, eps, params)
    outs = jax.block_until_ready(outs)
    x_dec, x_next_out, mu_z, logvar_z, z_t, mu_x_t = outs
    got = (x_dec, mu_z, logvar_z, z_t, mu_x_t)

    # tight check vs. matched-precision reference (bf16 operands, f32 accumulation)
    ref_bf16 = _reference(x_t, x_next, eps, params, matmul_dtype=jnp.bfloat16)
    for g, w in zip(got, ref_bf16):
        assert g.shape == w.shape
        err = float(jnp.max(jnp.abs(g - w)))
        assert err < 1e-2, err

    # coarse sanity vs. full-f32 reference (bounds the bf16 drift)
    ref_f32 = _reference(x_t, x_next, eps, params, matmul_dtype=jnp.float32)
    for g, w in zip(got, ref_f32):
        err = float(jnp.max(jnp.abs(g - w)))
        assert err < 0.25, err

    assert jnp.allclose(x_next_out, x_next)

    print("KERNEL_OK")
</pallas_src>

<mosaic_0001>
module attributes {stable_mosaic.version = 11 : i64} {
  func.func @_tdcvae_kernel(%arg0: i32, %arg1: memref<16x64xbf16, #tpu.memory_space<vmem>>, %arg2: memref<64x500xbf16, #tpu.memory_space<vmem>>, %arg3: memref<1x500xf32, #tpu.memory_space<vmem>>, %arg4: memref<500x200xbf16, #tpu.memory_space<vmem>>, %arg5: memref<1x200xf32, #tpu.memory_space<vmem>>, %arg6: memref<200x16xbf16, #tpu.memory_space<vmem>>, %arg7: memref<1x16xf32, #tpu.memory_space<vmem>>, %arg8: memref<64x40xbf16, #tpu.memory_space<vmem>>, %arg9: memref<8x40xbf16, #tpu.memory_space<vmem>>, %arg10: memref<1x40xf32, #tpu.memory_space<vmem>>, %arg11: memref<40x40xbf16, #tpu.memory_space<vmem>>, %arg12: memref<1x40xf32, #tpu.memory_space<vmem>>, %arg13: memref<40x64xbf16, #tpu.memory_space<vmem>>, %arg14: memref<1x64xf32, #tpu.memory_space<vmem>>, %arg15: memref<8x8xf32, #tpu.memory_space<vmem>>, %arg16: memref<8x128xf32, #tpu.memory_space<vmem>>) attributes {dimension_semantics = [#tpu.dimension_semantics<parallel>], iteration_bounds = array<i64: 2>, scalar_prefetch = 0 : i64, scratch_operands = 0 : i64, tpu.core_type = #tpu.core_type<tc>, window_params = [{transform_indices = @transform_0, window_bounds = array<i64: 16, 64>}, {pipeline_mode = #tpu.pipeline_mode<synchronous>, transform_indices = @transform_1, window_bounds = array<i64: 64, 500>}, {pipeline_mode = #tpu.pipeline_mode<synchronous>, transform_indices = @transform_2, window_bounds = array<i64: 1, 500>}, {pipeline_mode = #tpu.pipeline_mode<synchronous>, transform_indices = @transform_3, window_bounds = array<i64: 500, 200>}, {pipeline_mode = #tpu.pipeline_mode<synchronous>, transform_indices = @transform_4, window_bounds = array<i64: 1, 200>}, {pipeline_mode = #tpu.pipeline_mode<synchronous>, transform_indices = @transform_5, window_bounds = array<i64: 200, 16>}, {pipeline_mode = #tpu.pipeline_mode<synchronous>, transform_indices = @transform_6, window_bounds = array<i64: 1, 16>}, {pipeline_mode = #tpu.pipeline_mode<synchronous>, transform_indices = @transform_7, window_bounds = array<i64: 64, 40>}, {pipeline_mode = #tpu.pipeline_mode<synchronous>, transform_indices = @transform_8, window_bounds = array<i64: 8, 40>}, {pipeline_mode = #tpu.pipeline_mode<synchronous>, transform_indices = @transform_9, window_bounds = array<i64: 1, 40>}, {pipeline_mode = #tpu.pipeline_mode<synchronous>, transform_indices = @transform_10, window_bounds = array<i64: 40, 40>}, {pipeline_mode = #tpu.pipeline_mode<synchronous>, transform_indices = @transform_11, window_bounds = array<i64: 1, 40>}, {pipeline_mode = #tpu.pipeline_mode<synchronous>, transform_indices = @transform_12, window_bounds = array<i64: 40, 64>}, {pipeline_mode = #tpu.pipeline_mode<synchronous>, transform_indices = @transform_13, window_bounds = array<i64: 1, 64>}, {transform_indices = @transform_14, window_bounds = array<i64: 8, 8>}, {transform_indices = @transform_15, window_bounds = array<i64: 8, 128>}]} {
    %c0 = arith.constant 0 : index
    %c0_0 = arith.constant 0 : index
    %0 = vector.load %arg1[%c0, %c0_0] : memref<16x64xbf16, #tpu.memory_space<vmem>>, vector<16x64xbf16>
    %c0_1 = arith.constant 0 : index
    %c0_2 = arith.constant 0 : index
    %1 = vector.load %arg2[%c0_1, %c0_2] : memref<64x500xbf16, #tpu.memory_space<vmem>>, vector<64x500xbf16>
    %cst = arith.constant dense<0.000000e+00> : vector<16x500xf32>
    %2 = tpu.matmul %0, %1, %cst {dimension_numbers = #tpu.dot_dimension_numbers<[1], [0], [0], [1], [0, 0, 1, 1], [], []>} : vector<16x64xbf16>, vector<64x500xbf16>, vector<16x500xf32> -> vector<16x500xf32>
    %c0_3 = arith.constant 0 : index
    %c0_4 = arith.constant 0 : index
    %3 = vector.load %arg3[%c0_3, %c0_4] : memref<1x500xf32, #tpu.memory_space<vmem>>, vector<1x500xf32>
    %4 = vector.broadcast %3 : vector<1x500xf32> to vector<16x500xf32>
    %5 = arith.addf %2, %4 : vector<16x500xf32>
    %cst_5 = arith.constant 0.000000e+00 : f32
    %6 = vector.broadcast %cst_5 : f32 to vector<16x500xf32>
    %7 = arith.maximumf %5, %6 : vector<16x500xf32>
    %8 = arith.truncf %7 : vector<16x500xf32> to vector<16x500xbf16>
    %c0_6 = arith.constant 0 : index
    %c0_7 = arith.constant 0 : index
    %9 = vector.load %arg4[%c0_6, %c0_7] : memref<500x200xbf16, #tpu.memory_space<vmem>>, vector<500x200xbf16>
    %cst_8 = arith.constant dense<0.000000e+00> : vector<16x200xf32>
    %10 = tpu.matmul %8, %9, %cst_8 {dimension_numbers = #tpu.dot_dimension_numbers<[1], [0], [0], [1], [0, 0, 1, 1], [], []>} : vector<16x500xbf16>, vector<500x200xbf16>, vector<16x200xf32> -> vector<16x200xf32>
    %c0_9 = arith.constant 0 : index
    %c0_10 = arith.constant 0 : index
    %11 = vector.load %arg5[%c0_9, %c0_10] : memref<1x200xf32, #tpu.memory_space<vmem>>, vector<1x200xf32>
    %12 = vector.broadcast %11 : vector<1x200xf32> to vector<16x200xf32>
    %13 = arith.addf %10, %12 : vector<16x200xf32>
    %cst_11 = arith.constant 0.000000e+00 : f32
    %14 = vector.broadcast %cst_11 : f32 to vector<16x200xf32>
    %15 = arith.maximumf %13, %14 : vector<16x200xf32>
    %16 = arith.truncf %15 : vector<16x200xf32> to vector<16x200xbf16>
    %c0_12 = arith.constant 0 : index
    %c0_13 = arith.constant 0 : index
    %17 = vector.load %arg6[%c0_12, %c0_13] : memref<200x16xbf16, #tpu.memory_space<vmem>>, vector<200x16xbf16>
    %cst_14 = arith.constant dense<0.000000e+00> : vector<16x16xf32>
    %18 = tpu.matmul %16, %17, %cst_14 {dimension_numbers = #tpu.dot_dimension_numbers<[1], [0], [0], [1], [0, 0, 1, 1], [], []>} : vector<16x200xbf16>, vector<200x16xbf16>, vector<16x16xf32> -> vector<16x16xf32>
    %c0_15 = arith.constant 0 : index
    %c0_16 = arith.constant 0 : index
    %19 = vector.load %arg7[%c0_15, %c0_16] : memref<1x16xf32, #tpu.memory_space<vmem>>, vector<1x16xf32>
    %20 = vector.broadcast %19 : vector<1x16xf32> to vector<16x16xf32>
    %21 = arith.addf %18, %20 : vector<16x16xf32>
    %22 = vector.extract_strided_slice %21 {offsets = [0, 0], sizes = [8, 8], strides = [1, 1]} : vector<16x16xf32> to vector<8x8xf32>
    %23 = vector.extract_strided_slice %21 {offsets = [8, 0], sizes = [8, 8], strides = [1, 1]} : vector<16x16xf32> to vector<8x8xf32>
    %24 = vector.extract_strided_slice %21 {offsets = [0, 8], sizes = [8, 8], strides = [1, 1]} : vector<16x16xf32> to vector<8x8xf32>
    %25 = vector.extract_strided_slice %21 {offsets = [8, 8], sizes = [8, 8], strides = [1, 1]} : vector<16x16xf32> to vector<8x8xf32>
    %26 = arith.subf %23, %22 : vector<8x8xf32>
    %27 = arith.maximumf %25, %24 : vector<8x8xf32>
    %28 = arith.subf %25, %24 : vector<8x8xf32>
    %29 = math.absf %28 : vector<8x8xf32>
    %cst_17 = arith.constant 0.000000e+00 : f32
    %30 = vector.broadcast %cst_17 : f32 to vector<8x8xf32>
    %31 = arith.subf %30, %29 : vector<8x8xf32>
    %32 = math.exp %31 : vector<8x8xf32>
    %cst_18 = arith.constant 1.000000e+00 : f32
    %33 = vector.broadcast %cst_18 : f32 to vector<8x8xf32>
    %34 = arith.addf %33, %32 : vector<8x8xf32>
    %35 = math.log %34 : vector<8x8xf32>
    %36 = arith.addf %27, %35 : vector<8x8xf32>
    %cst_19 = arith.constant 5.000000e-01 : f32
    %37 = vector.broadcast %cst_19 : f32 to vector<8x8xf32>
    %38 = arith.mulf %37, %36 : vector<8x8xf32>
    %39 = math.exp %38 : vector<8x8xf32>
    %c0_20 = arith.constant 0 : index
    %c0_21 = arith.constant 0 : index
    %40 = vector.load %arg15[%c0_20, %c0_21] : memref<8x8xf32, #tpu.memory_space<vmem>>, vector<8x8xf32>
    %41 = arith.mulf %39, %40 : vector<8x8xf32>
    %42 = arith.addf %26, %41 : vector<8x8xf32>
    %43 = vector.extract_strided_slice %0 {offsets = [0, 0], sizes = [8, 64], strides = [1, 1]} : vector<16x64xbf16> to vector<8x64xbf16>
    %c0_22 = arith.constant 0 : index
    %c0_23 = arith.constant 0 : index
    %44 = vector.load %arg8[%c0_22, %c0_23] : memref<64x40xbf16, #tpu.memory_space<vmem>>, vector<64x40xbf16>
    %cst_24 = arith.constant dense<0.000000e+00> : vector<8x40xf32>
    %45 = tpu.matmul %43, %44, %cst_24 {dimension_numbers = #tpu.dot_dimension_numbers<[1], [0], [0], [1], [0, 0, 1, 1], [], []>} : vector<8x64xbf16>, vector<64x40xbf16>, vector<8x40xf32> -> vector<8x40xf32>
    %46 = arith.truncf %42 : vector<8x8xf32> to vector<8x8xbf16>
    %c0_25 = arith.constant 0 : index
    %c0_26 = arith.constant 0 : index
    %47 = vector.load %arg9[%c0_25, %c0_26] : memref<8x40xbf16, #tpu.memory_space<vmem>>, vector<8x40xbf16>
    %cst_27 = arith.constant dense<0.000000e+00> : vector<8x40xf32>
    %48 = tpu.matmul %46, %47, %cst_27 {dimension_numbers = #tpu.dot_dimension_numbers<[1], [0], [0], [1], [0, 0, 1, 1], [], []>} : vector<8x8xbf16>, vector<8x40xbf16>, vector<8x40xf32> -> vector<8x40xf32>
    %49 = arith.addf %45, %48 : vector<8x40xf32>
    %c0_28 = arith.constant 0 : index
    %c0_29 = arith.constant 0 : index
    %50 = vector.load %arg10[%c0_28, %c0_29] : memref<1x40xf32, #tpu.memory_space<vmem>>, vector<1x40xf32>
    %51 = vector.broadcast %50 : vector<1x40xf32> to vector<8x40xf32>
    %52 = arith.addf %49, %51 : vector<8x40xf32>
    %cst_30 = arith.constant 0.000000e+00 : f32
    %53 = vector.broadcast %cst_30 : f32 to vector<8x40xf32>
    %54 = arith.maximumf %52, %53 : vector<8x40xf32>
    %55 = arith.truncf %54 : vector<8x40xf32> to vector<8x40xbf16>
    %c0_31 = arith.constant 0 : index
    %c0_32 = arith.constant 0 : index
    %56 = vector.load %arg11[%c0_31, %c0_32] : memref<40x40xbf16, #tpu.memory_space<vmem>>, vector<40x40xbf16>
    %c0_33 = arith.constant 0 : index
    %c0_34 = arith.constant 0 : index
    %57 = vector.load %arg12[%c0_33, %c0_34] : memref<1x40xf32, #tpu.memory_space<vmem>>, vector<1x40xf32>
    %58 = vector.shape_cast %57 : vector<1x40xf32> to vector<1x40xf32>
    %59 = vector.broadcast %58 : vector<1x40xf32> to vector<8x40xf32>
    %cst_35 = arith.constant dense<0.000000e+00> : vector<8x40xf32>
    %60 = tpu.matmul %55, %56, %cst_35 {dimension_numbers = #tpu.dot_dimension_numbers<[1], [0], [0], [1], [0, 0, 1, 1], [], []>} : vector<8x40xbf16>, vector<40x40xbf16>, vector<8x40xf32> -> vector<8x40xf32>
    %61 = arith.addf %60, %59 : vector<8x40xf32>
    %cst_36 = arith.constant 0.000000e+00 : f32
    %62 = vector.broadcast %cst_36 : f32 to vector<8x40xf32>
    %63 = arith.maximumf %61, %62 : vector<8x40xf32>
    %64 = arith.truncf %63 : vector<8x40xf32> to vector<8x40xbf16>
    %cst_37 = arith.constant dense<0.000000e+00> : vector<8x40xf32>
    %65 = tpu.matmul %64, %56, %cst_37 {dimension_numbers = #tpu.dot_dimension_numbers<[1], [0], [0], [1], [0, 0, 1, 1], [], []>} : vector<8x40xbf16>, vector<40x40xbf16>, vector<8x40xf32> -> vector<8x40xf32>
    %66 = arith.addf %65, %59 : vector<8x40xf32>
    %cst_38 = arith.constant 0.000000e+00 : f32
    %67 = vector.broadcast %cst_38 : f32 to vector<8x40xf32>
    %68 = arith.maximumf %66, %67 : vector<8x40xf32>
    %69 = arith.truncf %68 : vector<8x40xf32> to vector<8x40xbf16>
    %cst_39 = arith.constant dense<0.000000e+00> : vector<8x40xf32>
    %70 = tpu.matmul %69, %56, %cst_39 {dimension_numbers = #tpu.dot_dimension_numbers<[1], [0], [0], [1], [0, 0, 1, 1], [], []>} : vector<8x40xbf16>, vector<40x40xbf16>, vector<8x40xf32> -> vector<8x40xf32>
    %71 = arith.addf %70, %59 : vector<8x40xf32>
    %cst_40 = arith.constant 0.000000e+00 : f32
    %72 = vector.broadcast %cst_40 : f32 to vector<8x40xf32>
    %73 = arith.maximumf %71, %72 : vector<8x40xf32>
    %74 = arith.truncf %73 : vector<8x40xf32> to vector<8x40xbf16>
    %c0_41 = arith.constant 0 : index
    %c0_42 = arith.constant 0 : index
    %75 = vector.load %arg13[%c0_41, %c0_42] : memref<40x64xbf16, #tpu.memory_space<vmem>>, vector<40x64xbf16>
    %cst_43 = arith.constant dense<0.000000e+00> : vector<8x64xf32>
    %76 = tpu.matmul %74, %75, %cst_43 {dimension_numbers = #tpu.dot_dimension_numbers<[1], [0], [0], [1], [0, 0, 1, 1], [], []>} : vector<8x40xbf16>, vector<40x64xbf16>, vector<8x64xf32> -> vector<8x64xf32>
    %c0_44 = arith.constant 0 : index
    %c0_45 = arith.constant 0 : index
    %77 = vector.load %arg14[%c0_44, %c0_45] : memref<1x64xf32, #tpu.memory_space<vmem>>, vector<1x64xf32>
    %78 = vector.broadcast %77 : vector<1x64xf32> to vector<8x64xf32>
    %79 = arith.addf %76, %78 : vector<8x64xf32>
    %80 = arith.negf %79 : vector<8x64xf32>
    %81 = math.exp %80 : vector<8x64xf32>
    %cst_46 = arith.constant 1.000000e+00 : f32
    %82 = vector.broadcast %cst_46 : f32 to vector<8x64xf32>
    %83 = arith.addf %82, %81 : vector<8x64xf32>
    %84 = arith.divf %82, %83 : vector<8x64xf32>
    %cst_47 = arith.constant 0.000000e+00 : f32
    %85 = vector.broadcast %cst_47 : f32 to vector<8x32xf32>
    %86 = tpu.concatenate %84, %26, %36, %42, %22, %85 in 1 : vector<8x64xf32>, vector<8x8xf32>, vector<8x8xf32>, vector<8x8xf32>, vector<8x8xf32>, vector<8x32xf32> -> vector<8x128xf32>
    %c0_48 = arith.constant 0 : index
    %c0_49 = arith.constant 0 : index
    %87 = vector.load %arg16[%c0_48, %c0_49] : memref<8x128xf32, #tpu.memory_space<vmem>>, vector<8x128xf32>
    tpu.vector_store %arg16[%c0_48, %c0_49], %86 {strides = array<i32>} : memref<8x128xf32, #tpu.memory_space<vmem>>, vector<8x128xf32>,
    return
  }
  func.func @transform_0(%arg0: i32) -> (i32, i32) {
    %c0_i32 = arith.constant 0 : i32
    %c0_i32_0 = arith.constant 0 : i32
    return %arg0, %c0_i32 : i32, i32
  }
  func.func @transform_1(%arg0: i32) -> (i32, i32) {
    %c0_i32 = arith.constant 0 : i32
    %c0_i32_0 = arith.constant 0 : i32
    %c0_i32_1 = arith.constant 0 : i32
    return %c0_i32, %c0_i32_0 : i32, i32
  }
  func.func @transform_2(%arg0: i32) -> (i32, i32) {
    %c0_i32 = arith.constant 0 : i32
    %c0_i32_0 = arith.constant 0 : i32
    %c0_i32_1 = arith.constant 0 : i32
    return %c0_i32, %c0_i32_0 : i32, i32
  }
  func.func @transform_3(%arg0: i32) -> (i32, i32) {
    %c0_i32 = arith.constant 0 : i32
    %c0_i32_0 = arith.constant 0 : i32
    %c0_i32_1 = arith.constant 0 : i32
    return %c0_i32, %c0_i32_0 : i32, i32
  }
  func.func @transform_4(%arg0: i32) -> (i32, i32) {
    %c0_i32 = arith.constant 0 : i32
    %c0_i32_0 = arith.constant 0 : i32
    %c0_i32_1 = arith.constant 0 : i32
    return %c0_i32, %c0_i32_0 : i32, i32
  }
  func.func @transform_5(%arg0: i32) -> (i32, i32) {
    %c0_i32 = arith.constant 0 : i32
    %c0_i32_0 = arith.constant 0 : i32
    %c0_i32_1 = arith.constant 0 : i32
    return %c0_i32, %c0_i32_0 : i32, i32
  }
  func.func @transform_6(%arg0: i32) -> (i32, i32) {
    %c0_i32 = arith.constant 0 : i32
    %c0_i32_0 = arith.constant 0 : i32
    %c0_i32_1 = arith.constant 0 : i32
    return %c0_i32, %c0_i32_0 : i32, i32
  }
  func.func @transform_7(%arg0: i32) -> (i32, i32) {
    %c0_i32 = arith.constant 0 : i32
    %c0_i32_0 = arith.constant 0 : i32
    %c0_i32_1 = arith.constant 0 : i32
    return %c0_i32, %c0_i32_0 : i32, i32
  }
  func.func @transform_8(%arg0: i32) -> (i32, i32) {
    %c0_i32 = arith.constant 0 : i32
    %c0_i32_0 = arith.constant 0 : i32
    %c0_i32_1 = arith.constant 0 : i32
    return %c0_i32, %c0_i32_0 : i32, i32
  }
  func.func @transform_9(%arg0: i32) -> (i32, i32) {
    %c0_i32 = arith.constant 0 : i32
    %c0_i32_0 = arith.constant 0 : i32
    %c0_i32_1 = arith.constant 0 : i32
    return %c0_i32, %c0_i32_0 : i32, i32
  }
  func.func @transform_10(%arg0: i32) -> (i32, i32) {
    %c0_i32 = arith.constant 0 : i32
    %c0_i32_0 = arith.constant 0 : i32
    %c0_i32_1 = arith.constant 0 : i32
    return %c0_i32, %c0_i32_0 : i32, i32
  }
  func.func @transform_11(%arg0: i32) -> (i32, i32) {
    %c0_i32 = arith.constant 0 : i32
    %c0_i32_0 = arith.constant 0 : i32
    %c0_i32_1 = arith.constant 0 : i32
    return %c0_i32, %c0_i32_0 : i32, i32
  }
  func.func @transform_12(%arg0: i32) -> (i32, i32) {
    %c0_i32 = arith.constant 0 : i32
    %c0_i32_0 = arith.constant 0 : i32
    %c0_i32_1 = arith.constant 0 : i32
    return %c0_i32, %c0_i32_0 : i32, i32
  }
  func.func @transform_13(%arg0: i32) -> (i32, i32) {
    %c0_i32 = arith.constant 0 : i32
    %c0_i32_0 = arith.constant 0 : i32
    %c0_i32_1 = arith.constant 0 : i32
    return %c0_i32, %c0_i32_0 : i32, i32
  }
  func.func @transform_14(%arg0: i32) -> (i32, i32) {
    %c0_i32 = arith.constant 0 : i32
    %c0_i32_0 = arith.constant 0 : i32
    return %arg0, %c0_i32 : i32, i32
  }
  func.func @transform_15(%arg0: i32) -> (i32, i32) {
    %c0_i32 = arith.constant 0 : i32
    %c0_i32_0 = arith.constant 0 : i32
    return %arg0, %c0_i32 : i32, i32
  }
}

</mosaic_0001>

<llo_original>
// kernel: td_cvae_forward.1
$region0: #{td_cvae_forward.1}
  #allocation0 [shape = 'u32[]', space=smem, size = 0x4, offset = 0x4, fixed_abs, tag = 'smem constant byte address 0x4 - core index']
  #allocation1 [shape = 'u32[144,128]{1,0:T(1,128)}', space=vmem, size = 0x12000, scoped, tag = 'internal scratch']
  %s0 = inlined_call_operand.vmem [shape: bf16[32,64], index: 0, kind: input, shape index: {}]
  %s1 = inlined_call_operand.vmem [shape: bf16[64,500], index: 1, kind: input, shape index: {}]
  %s2 = inlined_call_operand.vmem [shape: f32[1,500], index: 2, kind: input, shape index: {}]
  %s3 = inlined_call_operand.vmem [shape: bf16[500,200], index: 3, kind: input, shape index: {}]
  %s4 = inlined_call_operand.vmem [shape: f32[1,200], index: 4, kind: input, shape index: {}]
  %s5 = inlined_call_operand.vmem [shape: bf16[200,16], index: 5, kind: input, shape index: {}]
  %s6 = inlined_call_operand.vmem [shape: f32[1,16], index: 6, kind: input, shape index: {}]
  %s7 = inlined_call_operand.vmem [shape: bf16[64,40], index: 7, kind: input, shape index: {}]
  %s8 = inlined_call_operand.vmem [shape: bf16[8,40], index: 8, kind: input, shape index: {}]
  %s9 = inlined_call_operand.vmem [shape: f32[1,40], index: 9, kind: input, shape index: {}]
  %s10 = inlined_call_operand.vmem [shape: bf16[40,40], index: 10, kind: input, shape index: {}]
  %s11 = inlined_call_operand.vmem [shape: f32[1,40], index: 11, kind: input, shape index: {}]
  %s12 = inlined_call_operand.vmem [shape: bf16[40,64], index: 12, kind: input, shape index: {}]
  %s13 = inlined_call_operand.vmem [shape: f32[1,64], index: 13, kind: input, shape index: {}]
  %s14 = inlined_call_operand.vmem [shape: f32[16,8], index: 14, kind: input, shape index: {}]
  %s15 = inlined_call_operand.vmem [shape: f32[16,128], index: 15, kind: output, shape index: {}]
  %s16 = sld [smem:[#allocation0]]
  $region93: #{td_cvae_forward.1} parent=0
    _
  %s18 = ssub.s32 1, %s16
  %s19 = scalar_select 0, %s18, %s16
  loop: start=0, step=1, limit=4
  $region2: #{td_cvae_forward.1} parent=0 // loop_pre_header
    _
  $region3: #{td_cvae_forward.1} parent=0 // loop_header
    %s21 = sphi 0, %s25
    %p22 = scmp.ge.s32.totalorder %s21, 4
    %s31 = sphi 0, %s33
    %s34 = sphi 0, %s31
    %s35 = sphi 0, %s34
    %s51 = sphi 0, %s35
    %s55 = sphi 0, %s55
    %s57 = sphi 0, %s55
    %s58 = sphi 0, %s57
    %s72 = sphi 0, %s58
    %s76 = sphi 0, %s76
    %s78 = sphi 0, %s76
    %s79 = sphi 0, %s78
    %s93 = sphi 0, %s79
    %s97 = sphi 0, %s97
    %s99 = sphi 0, %s97
    %s100 = sphi 0, %s99
    %s114 = sphi 0, %s100
    %s118 = sphi 0, %s118
    %s120 = sphi 0, %s118
    %s121 = sphi 0, %s120
    %s135 = sphi 0, %s121
    %s139 = sphi 0, %s139
    %s141 = sphi 0, %s139
    %s142 = sphi 0, %s141
    %s156 = sphi 0, %s142
    %s160 = sphi 0, %s160
    %s162 = sphi 0, %s160
    %s163 = sphi 0, %s162
    %s177 = sphi 0, %s163
    %s181 = sphi 0, %s181
    %s183 = sphi 0, %s181
    %s184 = sphi 0, %s183
    %s198 = sphi 0, %s184
    %s202 = sphi 0, %s202
    %s204 = sphi 0, %s202
    %s205 = sphi 0, %s204
    %s219 = sphi 0, %s205
    %s223 = sphi 0, %s223
    %s225 = sphi 0, %s223
    %s226 = sphi 0, %s225
    %s240 = sphi 0, %s226
    %s244 = sphi 0, %s244
    %s246 = sphi 0, %s244
    %s247 = sphi 0, %s246
    %s261 = sphi 0, %s247
    %s265 = sphi 0, %s265
    %s267 = sphi 0, %s265
    %s268 = sphi 0, %s267
    %s282 = sphi 0, %s268
    %s286 = sphi 0, %s286
    %s288 = sphi 0, %s286
    %s289 = sphi 0, %s288
    %s303 = sphi 0, %s289
    %s307 = sphi 0, %s307
    %s309 = sphi 0, %s307
    %s310 = sphi 0, %s309
    %s324 = sphi 0, %s310
    %s330 = sphi 0, %s332
    %s333 = sphi 0, %s330
    %s334 = sphi 0, %s333
    %s350 = sphi 0, %s334
    %s356 = sphi 0, %s358
    %s359 = sphi 0, %s356
    %s360 = sphi 0, %s359
    %s376 = sphi 0, %s360
  $region4: #{td_cvae_forward.1} parent=0 // loop_header_branch
    %24 = sbr.rel (%p22) target = $region8
  $region5: #{td_cvae_forward.1} parent=0 // loop_body
    %s26 = ssub.s32 %s21, 1
    %s27 = ssub.s32 %s21, 2
    %s28 = sadd.s32 %s21, 1
    %s29 = ssub.s32 %s21, %s28
    %p30 = scmp.eq.s32.totalorder %s29, 0
    %s32 = sadd.s32 %s31, 1
    %s33 = scalar_select %p30, %s31, %s32
    %p36 = pneg %p30
    %p37 = scmp.eq.s32.totalorder %s21, 1
    %p38 = por %p36, %p37
    %p39 = scmp.ne.s32.totalorder %s31, %s34
    %p40 = scmp.eq.s32.totalorder %s21, 0
    %p41 = por %p39, %p40
    %p42 = scmp.ne.s32.totalorder %s31, %s34
    %p43 = scmp.eq.s32.totalorder %s26, 1
    %p44 = por %p42, %p43
    %p45 = scmp.ne.s32.totalorder %s34, %s35
    %p46 = scmp.eq.s32.totalorder %s26, 0
    %p47 = por %p45, %p46
    %p48 = scmp.ne.s32.totalorder %s34, %s35
    %p49 = scmp.eq.s32.totalorder %s27, 1
    %p50 = por %p48, %p49
    %p52 = scmp.ne.s32.totalorder %s35, %s51
    %p53 = scmp.eq.s32.totalorder %s27, 0
    %p54 = por %p52, %p53
    %s56 = sadd.s32 %s55, 1
    %p59 = scmp.eq.s32.totalorder %s21, 1
    %p60 = scmp.ne.s32.totalorder %s55, %s57
    %p61 = scmp.eq.s32.totalorder %s21, 0
    %p62 = por %p60, %p61
    %p63 = scmp.ne.s32.totalorder %s55, %s57
    %p64 = scmp.eq.s32.totalorder %s26, 1
    %p65 = por %p63, %p64
    %p66 = scmp.ne.s32.totalorder %s57, %s58
    %p67 = scmp.eq.s32.totalorder %s26, 0
    %p68 = por %p66, %p67
    %p69 = scmp.ne.s32.totalorder %s57, %s58
    %p70 = scmp.eq.s32.totalorder %s27, 1
    %p71 = por %p69, %p70
    %p73 = scmp.ne.s32.totalorder %s58, %s72
    %p74 = scmp.eq.s32.totalorder %s27, 0
    %p75 = por %p73, %p74
    %s77 = sadd.s32 %s76, 1
    %p80 = scmp.eq.s32.totalorder %s21, 1
    %p81 = scmp.ne.s32.totalorder %s76, %s78
    %p82 = scmp.eq.s32.totalorder %s21, 0
    %p83 = por %p81, %p82
    %p84 = scmp.ne.s32.totalorder %s76, %s78
    %p85 = scmp.eq.s32.totalorder %s26, 1
    %p86 = por %p84, %p85
    %p87 = scmp.ne.s32.totalorder %s78, %s79
    %p88 = scmp.eq.s32.totalorder %s26, 0
    %p89 = por %p87, %p88
    %p90 = scmp.ne.s32.totalorder %s78, %s79
    %p91 = scmp.eq.s32.totalorder %s27, 1
    %p92 = por %p90, %p91
    %p94 = scmp.ne.s32.totalorder %s79, %s93
    %p95 = scmp.eq.s32.totalorder %s27, 0
    %p96 = por %p94, %p95
    %s98 = sadd.s32 %s97, 1
    %p101 = scmp.eq.s32.totalorder %s21, 1
    %p102 = scmp.ne.s32.totalorder %s97, %s99
    %p103 = scmp.eq.s32.totalorder %s21, 0
    %p104 = por %p102, %p103
    %p105 = scmp.ne.s32.totalorder %s97, %s99
    %p106 = scmp.eq.s32.totalorder %s26, 1
    %p107 = por %p105, %p106
    %p108 = scmp.ne.s32.totalorder %s99, %s100
    %p109 = scmp.eq.s32.totalorder %s26, 0
    %p110 = por %p108, %p109
    %p111 = scmp.ne.s32.totalorder %s99, %s100
    %p112 = scmp.eq.s32.totalorder %s27, 1
    %p113 = por %p111, %p112
    %p115 = scmp.ne.s32.totalorder %s100, %s114
    %p116 = scmp.eq.s32.totalorder %s27, 0
    %p117 = por %p115, %p116
    %s119 = sadd.s32 %s118, 1
    %p122 = scmp.eq.s32.totalorder %s21, 1
    %p123 = scmp.ne.s32.totalorder %s118, %s120
    %p124 = scmp.eq.s32.totalorder %s21, 0
    %p125 = por %p123, %p124
    %p126 = scmp.ne.s32.totalorder %s118, %s120
    %p127 = scmp.eq.s32.totalorder %s26, 1
    %p128 = por %p126, %p127
    %p129 = scmp.ne.s32.totalorder %s120, %s121
    %p130 = scmp.eq.s32.totalorder %s26, 0
    %p131 = por %p129, %p130
    %p132 = scmp.ne.s32.totalorder %s120, %s121
    %p133 = scmp.eq.s32.totalorder %s27, 1
    %p134 = por %p132, %p133
    %p136 = scmp.ne.s32.totalorder %s121, %s135
    %p137 = scmp.eq.s32.totalorder %s27, 0
    %p138 = por %p136, %p137
    %s140 = sadd.s32 %s139, 1
    %p143 = scmp.eq.s32.totalorder %s21, 1
    %p144 = scmp.ne.s32.totalorder %s139, %s141
    %p145 = scmp.eq.s32.totalorder %s21, 0
    %p146 = por %p144, %p145
    %p147 = scmp.ne.s32.totalorder %s139, %s141
    %p148 = scmp.eq.s32.totalorder %s26, 1
    %p149 = por %p147, %p148
    %p150 = scmp.ne.s32.totalorder %s141, %s142
    %p151 = scmp.eq.s32.totalorder %s26, 0
    %p152 = por %p150, %p151
    %p153 = scmp.ne.s32.totalorder %s141, %s142
    %p154 = scmp.eq.s32.totalorder %s27, 1
    %p155 = por %p153, %p154
    %p157 = scmp.ne.s32.totalorder %s142, %s156
    %p158 = scmp.eq.s32.totalorder %s27, 0
    %p159 = por %p157, %p158
    %s161 = sadd.s32 %s160, 1
    %p164 = scmp.eq.s32.totalorder %s21, 1
    %p165 = scmp.ne.s32.totalorder %s160, %s162
    %p166 = scmp.eq.s32.totalorder %s21, 0
    %p167 = por %p165, %p166
    %p168 = scmp.ne.s32.totalorder %s160, %s162
    %p169 = scmp.eq.s32.totalorder %s26, 1
    %p170 = por %p168, %p169
    %p171 = scmp.ne.s32.totalorder %s162, %s163
    %p172 = scmp.eq.s32.totalorder %s26, 0
    %p173 = por %p171, %p172
    %p174 = scmp.ne.s32.totalorder %s162, %s163
    %p175 = scmp.eq.s32.totalorder %s27, 1
    %p176 = por %p174, %p175
    %p178 = scmp.ne.s32.totalorder %s163, %s177
    %p179 = scmp.eq.s32.totalorder %s27, 0
    %p180 = por %p178, %p179
    %s182 = sadd.s32 %s181, 1
    %p185 = scmp.eq.s32.totalorder %s21, 1
    %p186 = scmp.ne.s32.totalorder %s181, %s183
    %p187 = scmp.eq.s32.totalorder %s21, 0
    %p188 = por %p186, %p187
    %p189 = scmp.ne.s32.totalorder %s181, %s183
    %p190 = scmp.eq.s32.totalorder %s26, 1
    %p191 = por %p189, %p190
    %p192 = scmp.ne.s32.totalorder %s183, %s184
    %p193 = scmp.eq.s32.totalorder %s26, 0
    %p194 = por %p192, %p193
    %p195 = scmp.ne.s32.totalorder %s183, %s184
    %p196 = scmp.eq.s32.totalorder %s27, 1
    %p197 = por %p195, %p196
    %p199 = scmp.ne.s32.totalorder %s184, %s198
    %p200 = scmp.eq.s32.totalorder %s27, 0
    %p201 = por %p199, %p200
    %s203 = sadd.s32 %s202, 1
    %p206 = scmp.eq.s32.totalorder %s21, 1
    %p207 = scmp.ne.s32.totalorder %s202, %s204
    %p208 = scmp.eq.s32.totalorder %s21, 0
    %p209 = por %p207, %p208
    %p210 = scmp.ne.s32.totalorder %s202, %s204
    %p211 = scmp.eq.s32.totalorder %s26, 1
    %p212 = por %p210, %p211
    %p213 = scmp.ne.s32.totalorder %s204, %s205
    %p214 = scmp.eq.s32.totalorder %s26, 0
    %p215 = por %p213, %p214
    %p216 = scmp.ne.s32.totalorder %s204, %s205
    %p217 = scmp.eq.s32.totalorder %s27, 1
    %p218 = por %p216, %p217
    %p220 = scmp.ne.s32.totalorder %s205, %s219
    %p221 = scmp.eq.s32.totalorder %s27, 0
    %p222 = por %p220, %p221
    %s224 = sadd.s32 %s223, 1
    %p227 = scmp.eq.s32.totalorder %s21, 1
    %p228 = scmp.ne.s32.totalorder %s223, %s225
    %p229 = scmp.eq.s32.totalorder %s21, 0
    %p230 = por %p228, %p229
    %p231 = scmp.ne.s32.totalorder %s223, %s225
    %p232 = scmp.eq.s32.totalorder %s26, 1
    %p233 = por %p231, %p232
    %p234 = scmp.ne.s32.totalorder %s225, %s226
    %p235 = scmp.eq.s32.totalorder %s26, 0
    %p236 = por %p234, %p235
    %p237 = scmp.ne.s32.totalorder %s225, %s226
    %p238 = scmp.eq.s32.totalorder %s27, 1
    %p239 = por %p237, %p238
    %p241 = scmp.ne.s32.totalorder %s226, %s240
    %p242 = scmp.eq.s32.totalorder %s27, 0
    %p243 = por %p241, %p242
    %s245 = sadd.s32 %s244, 1
    %p248 = scmp.eq.s32.totalorder %s21, 1
    %p249 = scmp.ne.s32.totalorder %s244, %s246
    %p250 = scmp.eq.s32.totalorder %s21, 0
    %p251 = por %p249, %p250
    %p252 = scmp.ne.s32.totalorder %s244, %s246
    %p253 = scmp.eq.s32.totalorder %s26, 1
    %p254 = por %p252, %p253
    %p255 = scmp.ne.s32.totalorder %s246, %s247
    %p256 = scmp.eq.s32.totalorder %s26, 0
    %p257 = por %p255, %p256
    %p258 = scmp.ne.s32.totalorder %s246, %s247
    %p259 = scmp.eq.s32.totalorder %s27, 1
    %p260 = por %p258, %p259
    %p262 = scmp.ne.s32.totalorder %s247, %s261
    %p263 = scmp.eq.s32.totalorder %s27, 0
    %p264 = por %p262, %p263
    %s266 = sadd.s32 %s265, 1
    %p269 = scmp.eq.s32.totalorder %s21, 1
    %p270 = scmp.ne.s32.totalorder %s265, %s267
    %p271 = scmp.eq.s32.totalorder %s21, 0
    %p272 = por %p270, %p271
    %p273 = scmp.ne.s32.totalorder %s265, %s267
    %p274 = scmp.eq.s32.totalorder %s26, 1
    %p275 = por %p273, %p274
    %p276 = scmp.ne.s32.totalorder %s267, %s268
    %p277 = scmp.eq.s32.totalorder %s26, 0
    %p278 = por %p276, %p277
    %p279 = scmp.ne.s32.totalorder %s267, %s268
    %p280 = scmp.eq.s32.totalorder %s27, 1
    %p281 = por %p279, %p280
    %p283 = scmp.ne.s32.totalorder %s268, %s282
    %p284 = scmp.eq.s32.totalorder %s27, 0
    %p285 = por %p283, %p284
    %s287 = sadd.s32 %s286, 1
    %p290 = scmp.eq.s32.totalorder %s21, 1
    %p291 = scmp.ne.s32.totalorder %s286, %s288
    %p292 = scmp.eq.s32.totalorder %s21, 0
    %p293 = por %p291, %p292
    %p294 = scmp.ne.s32.totalorder %s286, %s288
    %p295 = scmp.eq.s32.totalorder %s26, 1
    %p296 = por %p294, %p295
    %p297 = scmp.ne.s32.totalorder %s288, %s289
    %p298 = scmp.eq.s32.totalorder %s26, 0
    %p299 = por %p297, %p298
    %p300 = scmp.ne.s32.totalorder %s288, %s289
    %p301 = scmp.eq.s32.totalorder %s27, 1
    %p302 = por %p300, %p301
    %p304 = scmp.ne.s32.totalorder %s289, %s303
    %p305 = scmp.eq.s32.totalorder %s27, 0
    %p306 = por %p304, %p305
    %s308 = sadd.s32 %s307, 1
    %p311 = scmp.eq.s32.totalorder %s21, 1
    %p312 = scmp.ne.s32.totalorder %s307, %s309
    %p313 = scmp.eq.s32.totalorder %s21, 0
    %p314 = por %p312, %p313
    %p315 = scmp.ne.s32.totalorder %s307, %s309
    %p316 = scmp.eq.s32.totalorder %s26, 1
    %p317 = por %p315, %p316
    %p318 = scmp.ne.s32.totalorder %s309, %s310
    %p319 = scmp.eq.s32.totalorder %s26, 0
    %p320 = por %p318, %p319
    %p321 = scmp.ne.s32.totalorder %s309, %s310
    %p322 = scmp.eq.s32.totalorder %s27, 1
    %p323 = por %p321, %p322
    %p325 = scmp.ne.s32.totalorder %s310, %s324
    %p326 = scmp.eq.s32.totalorder %s27, 0
    %p327 = por %p325, %p326
    %s328 = ssub.s32 %s21, %s28
    %p329 = scmp.eq.s32.totalorder %s328, 0
    %s331 = sadd.s32 %s330, 1
    %s332 = scalar_select %p329, %s330, %s331
    %p335 = pneg %p329
    %p336 = scmp.eq.s32.totalorder %s21, 1
    %p337 = por %p335, %p336
    %p338 = scmp.ne.s32.totalorder %s330, %s333
    %p339 = scmp.eq.s32.totalorder %s21, 0
    %p340 = por %p338, %p339
    %p341 = scmp.ne.s32.totalorder %s330, %s333
    %p342 = scmp.eq.s32.totalorder %s26, 1
    %p343 = por %p341, %p342
    %p344 = scmp.ne.s32.totalorder %s333, %s334
    %p345 = scmp.eq.s32.totalorder %s26, 0
    %p346 = por %p344, %p345
    %p347 = scmp.ne.s32.totalorder %s333, %s334
    %p348 = scmp.eq.s32.totalorder %s27, 1
    %p349 = por %p347, %p348
    %p351 = scmp.ne.s32.totalorder %s334, %s350
    %p352 = scmp.eq.s32.totalorder %s27, 0
    %p353 = por %p351, %p352
    %s354 = ssub.s32 %s21, %s28
    %p355 = scmp.eq.s32.totalorder %s354, 0
    %s357 = sadd.s32 %s356, 1
    %s358 = scalar_select %p355, %s356, %s357
    %p361 = pneg %p355
    %p362 = scmp.eq.s32.totalorder %s21, 1
    %p363 = por %p361, %p362
    %p364 = scmp.ne.s32.totalorder %s356, %s359
    %p365 = scmp.eq.s32.totalorder %s21, 0
    %p366 = por %p364, %p365
    %p367 = scmp.ne.s32.totalorder %s356, %s359
    %p368 = scmp.eq.s32.totalorder %s26, 1
    %p369 = por %p367, %p368
    %p370 = scmp.ne.s32.totalorder %s359, %s360
    %p371 = scmp.eq.s32.totalorder %s26, 0
    %p372 = por %p370, %p371
    %p373 = scmp.ne.s32.totalorder %s359, %s360
    %p374 = scmp.eq.s32.totalorder %s27, 1
    %p375 = por %p373, %p374
    %p377 = scmp.ne.s32.totalorder %s360, %s376
    %p378 = scmp.eq.s32.totalorder %s27, 0
    %p379 = por %p377, %p378
    %p380 = scmp.le.s32.totalorder 1, %s21
    %p381 = scmp.lt.s32.totalorder %s21, 3
    %p382 = pnand %p380, %p381
    %p383 = pneg %p382
    // Predicated region
    $region9: #{td_cvae_forward.1} parent=5 // pred_check
      _
    $region10: #{td_cvae_forward.1} parent=5 // pred_check_branch
      %385 = sbr.rel (%p382) target = $region12
    $region11: #{td_cvae_forward.1} parent=5 // pred_region
      %s386 = ssub.s32 %s21, 1
      // Predicated region
      $region13: #{td_cvae_forward.1} parent=11 // pred_check
        %p387 = pneg %p68
      $region14: #{td_cvae_forward.1} parent=11 // pred_check_branch
        %389 = sbr.rel (%p387) target = $region16
      $region15: #{td_cvae_forward.1} parent=11 // pred_region
        _
      $region16: #{td_cvae_forward.1} parent=11 // pred_fallthru
        _
      // Predicated region
      $region17: #{td_cvae_forward.1} parent=11 // pred_check
        %p390 = pneg %p89
      $region18: #{td_cvae_forward.1} parent=11 // pred_check_branch
        %392 = sbr.rel (%p390) target = $region20
      $region19: #{td_cvae_forward.1} parent=11 // pred_region
        _
      $region20: #{td_cvae_forward.1} parent=11 // pred_fallthru
        _
      // Predicated region
      $region21: #{td_cvae_forward.1} parent=11 // pred_check
        %p393 = pneg %p110
      $region22: #{td_cvae_forward.1} parent=11 // pred_check_branch
        %395 = sbr.rel (%p393) target = $region24
      $region23: #{td_cvae_forward.1} parent=11 // pred_region
        _
      $region24: #{td_cvae_forward.1} parent=11 // pred_fallthru
        _
      // Predicated region
      $region25: #{td_cvae_forward.1} parent=11 // pred_check
        %p396 = pneg %p131
      $region26: #{td_cvae_forward.1} parent=11 // pred_check_branch
        %398 = sbr.rel (%p396) target = $region28
      $region27: #{td_cvae_forward.1} parent=11 // pred_region
        _
      $region28: #{td_cvae_forward.1} parent=11 // pred_fallthru
        _
      // Predicated region
      $region29: #{td_cvae_forward.1} parent=11 // pred_check
        %p399 = pneg %p152
      $region30: #{td_cvae_forward.1} parent=11 // pred_check_branch
        %401 = sbr.rel (%p399) target = $region32
      $region31: #{td_cvae_forward.1} parent=11 // pred_region
        _
      $region32: #{td_cvae_forward.1} parent=11 // pred_fallthru
        _
      // Predicated region
      $region33: #{td_cvae_forward.1} parent=11 // pred_check
        %p402 = pneg %p173
      $region34: #{td_cvae_forward.1} parent=11 // pred_check_branch
        %404 = sbr.rel (%p402) target = $region36
      $region35: #{td_cvae_forward.1} parent=11 // pred_region
        _
      $region36: #{td_cvae_forward.1} parent=11 // pred_fallthru
        _
      // Predicated region
      $region37: #{td_cvae_forward.1} parent=11 // pred_check
        %p405 = pneg %p194
      $region38: #{td_cvae_forward.1} parent=11 // pred_check_branch
        %407 = sbr.rel (%p405) target = $region40
      $region39: #{td_cvae_forward.1} parent=11 // pred_region
        _
      $region40: #{td_cvae_forward.1} parent=11 // pred_fallthru
        _
      // Predicated region
      $region41: #{td_cvae_forward.1} parent=11 // pred_check
        %p408 = pneg %p215
      $region42: #{td_cvae_forward.1} parent=11 // pred_check_branch
        %410 = sbr.rel (%p408) target = $region44
      $region43: #{td_cvae_forward.1} parent=11 // pred_region
        _
      $region44: #{td_cvae_forward.1} parent=11 // pred_fallthru
        _
      // Predicated region
      $region45: #{td_cvae_forward.1} parent=11 // pred_check
        %p411 = pneg %p236
      $region46: #{td_cvae_forward.1} parent=11 // pred_check_branch
        %413 = sbr.rel (%p411) target = $region48
      $region47: #{td_cvae_forward.1} parent=11 // pred_region
        _
      $region48: #{td_cvae_forward.1} parent=11 // pred_fallthru
        _
      // Predicated region
      $region49: #{td_cvae_forward.1} parent=11 // pred_check
        %p414 = pneg %p257
      $region50: #{td_cvae_forward.1} parent=11 // pred_check_branch
        %416 = sbr.rel (%p414) target = $region52
      $region51: #{td_cvae_forward.1} parent=11 // pred_region
        _
      $region52: #{td_cvae_forward.1} parent=11 // pred_fallthru
        _
      // Predicated region
      $region53: #{td_cvae_forward.1} parent=11 // pred_check
        %p417 = pneg %p278
      $region54: #{td_cvae_forward.1} parent=11 // pred_check_branch
        %419 = sbr.rel (%p417) target = $region56
      $region55: #{td_cvae_forward.1} parent=11 // pred_region
        _
      $region56: #{td_cvae_forward.1} parent=11 // pred_fallthru
        _
      // Predicated region
      $region57: #{td_cvae_forward.1} parent=11 // pred_check
        %p420 = pneg %p299
      $region58: #{td_cvae_forward.1} parent=11 // pred_check_branch
        %422 = sbr.rel (%p420) target = $region60
      $region59: #{td_cvae_forward.1} parent=11 // pred_region
        _
      $region60: #{td_cvae_forward.1} parent=11 // pred_fallthru
        _
      // Predicated region
      $region61: #{td_cvae_forward.1} parent=11 // pred_check
        %p423 = pneg %p320
      $region62: #{td_cvae_forward.1} parent=11 // pred_check_branch
        %425 = sbr.rel (%p423) target = $region64
      $region63: #{td_cvae_forward.1} parent=11 // pred_region
        _
      $region64: #{td_cvae_forward.1} parent=11 // pred_fallthru
        _
    $region12: #{td_cvae_forward.1} parent=5 // pred_fallthru
      _
    %p426 = scmp.lt.s32.totalorder %s21, 2
    // Predicated region
    $region65: #{td_cvae_forward.1} parent=5 // pred_check
      %p427 = pneg %p426
    $region66: #{td_cvae_forward.1} parent=5 // pred_check_branch
      %429 = sbr.rel (%p427) target = $region68
    $region67: #{td_cvae_forward.1} parent=5 // pred_region
      // Predicated region
      $region69: #{td_cvae_forward.1} parent=67 // pred_check
        %p430 = pneg %p41
      $region70: #{td_cvae_forward.1} parent=67 // pred_check_branch
        %432 = sbr.rel (%p430) target = $region72
      $region71: #{td_cvae_forward.1} parent=67 // pred_region
        %s433 = smul.u32 2, %s21
        %p434 = scmp.lt.s32.totalorder %s433, 3
        %s435 = scalar_select %p434, %s433, 3
        %s436 = smul.addr %s435, 4
        %s437 = scalar_lea.vmem %s0, %s436
        %s438 = smul.u32 2, %s21
      $region72: #{td_cvae_forward.1} parent=67 // pred_fallthru
        _
      // Predicated region
      $region73: #{td_cvae_forward.1} parent=67 // pred_check
        %p439 = pneg %p340
      $region74: #{td_cvae_forward.1} parent=67 // pred_check_branch
        %441 = sbr.rel (%p439) target = $region76
      $region75: #{td_cvae_forward.1} parent=67 // pred_region
        %p442 = scmp.lt.s32.totalorder %s21, 1
        %s443 = scalar_select %p442, %s21, 1
        %s444 = smul.addr %s443, 8
        %s445 = scalar_lea.vmem %s14, %s444
      $region76: #{td_cvae_forward.1} parent=67 // pred_fallthru
        _
    $region68: #{td_cvae_forward.1} parent=5 // pred_fallthru
      _
    %p446 = scmp.le.s32.totalorder 1, %s21
    %p447 = scmp.lt.s32.totalorder %s21, 3
    %p448 = pnand %p446, %p447
    %p449 = pneg %p448
    // Predicated region
    $region77: #{td_cvae_forward.1} parent=5 // pred_check
      _
    $region78: #{td_cvae_forward.1} parent=5 // pred_check_branch
      %451 = sbr.rel (%p448) target = $region80
    $region79: #{td_cvae_forward.1} parent=5 // pred_region
      %s452 = ssub.s32 %s21, 1
      %s453 = smul.u32 2, %s26
      %p454 = scmp.lt.s32.totalorder %s453, 3
      %s455 = scalar_select %p454, %s453, 3
      %s456 = smul.addr %s455, 4
      %s457 = scalar_lea.vmem %s0, %s456
      %p458 = pneg %p47
      %p459 = pneg %p44
      %p460 = pneg %p68
      %p461 = pneg %p65
      %p462 = pneg %p89
      %p463 = pneg %p86
      %p464 = pneg %p110
      %p465 = pneg %p107
      %p466 = pneg %p131
      %p467 = pneg %p128
      %p468 = pneg %p152
      %p469 = pneg %p149
      %p470 = pneg %p173
      %p471 = pneg %p170
      %p472 = pneg %p194
      %p473 = pneg %p191
      %p474 = pneg %p215
      %p475 = pneg %p212
      %p476 = pneg %p236
      %p477 = pneg %p233
      %p478 = pneg %p257
      %p479 = pneg %p254
      %p480 = pneg %p278
      %p481 = pneg %p275
      %p482 = pneg %p299
      %p483 = pneg %p296
      %p484 = pneg %p320
      %p485 = pneg %p317
      %p486 = scmp.lt.s32.totalorder %s26, 1
      %s487 = scalar_select %p486, %s26, 1
      %s488 = smul.addr %s487, 8
      %s489 = scalar_lea.vmem %s14, %s488
      %p490 = pneg %p346
      %p491 = pneg %p343
      %p492 = pneg %p372
      %p493 = pneg %p369
      %p494 = scmp.lt.s32.totalorder %s26, 1
      %s495 = scalar_select %p494, %s26, 1
      %s496 = smul.addr %s495, 8
      %s497 = scalar_lea.vmem %s15, %s496
      %s498 = smul.u32 2, %s26
      %p499 = scmp.lt.s32.totalorder %s498, 3
      %s500 = scalar_select %p499, %s498, 3
      %s501 = smul.addr %s500, 4
      %s502 = scalar_lea.vmem %s0, %s501
      %s503 = smul.u32 2, %s26
      %p504 = scmp.lt.s32.totalorder %s26, 1
      %s505 = scalar_select %p504, %s26, 1
      %s506 = smul.addr %s505, 8
      %s507 = scalar_lea.vmem %s14, %s506
      %p508 = scmp.lt.s32.totalorder %s26, 1
      %s509 = scalar_select %p508, %s26, 1
      %s510 = smul.addr %s509, 8
      %s511 = scalar_lea.vmem %s15, %s510
      %v513 = vld [vmem:[%s502] sm:$0xf]
      %v514 = vld [vmem:[%s502 + $0x4] sm:$0xf]
      %v515 = vld [vmem:[%s1] sm:$0xff]
      %v516 = vld [vmem:[%s1 + $0x8] sm:$0xff]
      %v517 = vld [vmem:[%s1 + $0x10] sm:$0xff]
      %v518 = vld [vmem:[%s1 + $0x18] sm:$0xff]
      %v519 = vld [vmem:[%s1 + $0x20] sm:$0xff]
      %v520 = vld [vmem:[%s1 + $0x28] sm:$0xff]
      %v521 = vld [vmem:[%s1 + $0x30] sm:$0xff]
      %v522 = vld [vmem:[%s1 + $0x38] sm:$0xff]
      %v523 = vld [vmem:[%s1 + $0x40] sm:$0xff]
      %v524 = vld [vmem:[%s1 + $0x48] sm:$0xff]
      %v525 = vld [vmem:[%s1 + $0x50] sm:$0xff]
      %v526 = vld [vmem:[%s1 + $0x58] sm:$0xff]
      %v527 = vld [vmem:[%s1 + $0x60] sm:$0xff]
      %v528 = vld [vmem:[%s1 + $0x68] sm:$0xff]
      %v529 = vld [vmem:[%s1 + $0x70] sm:$0xff]
      %v530 = vld [vmem:[%s1 + $0x78] sm:$0xff]
      %v531 = vld [vmem:[%s2] sm:$0xf]
      %v533 = vlaneseq
      %v534 = vshrl.u32 %v533, 7
      %v535 = vsub.s32 0, %v534
      %v536 = vrot.slane %v531, %v535
      %v537 = vlaneseq
      %v538 = vshrl.u32 %v537, 7
      %v539 = vsub.s32 1, %v538
      %v540 = vrot.slane %v531, %v539
      %v541 = vlaneseq
      %v542 = vshrl.u32 %v541, 7
      %v543 = vsub.s32 2, %v542
      %v544 = vrot.slane %v531, %v543
      %v545 = vlaneseq
      %v546 = vshrl.u32 %v545, 7
      %v547 = vsub.s32 3, %v546
      %v548 = vrot.slane %v531, %v547
      %v555 = vunpack.c.l.b16 %v513
      %v556 = vunpack.c.l.b16 %v514
      %v557 = vpack.c.b16 %v556, %v555
      %v574 = vunpack.c.l.b16 %v515
      %v575 = vunpack.c.h.b16 %v515
      %v576 = vunpack.c.l.b16 %v516
      %v577 = vunpack.c.h.b16 %v516
      %v578 = vunpack.c.l.b16 %v517
      %v579 = vunpack.c.h.b16 %v517
      %v580 = vunpack.c.l.b16 %v518
      %v581 = vunpack.c.h.b16 %v518
      %v582 = vunpack.c.l.b16 %v519
      %v583 = vunpack.c.h.b16 %v519
      %v584 = vunpack.c.l.b16 %v520
      %v585 = vunpack.c.h.b16 %v520
      %v586 = vunpack.c.l.b16 %v521
      %v587 = vunpack.c.h.b16 %v521
      %v588 = vunpack.c.l.b16 %v522
      %v589 = vunpack.c.h.b16 %v522
      %v590 = vunpack.c.l.b16 %v523
      %v591 = vunpack.c.h.b16 %v523
      %v592 = vunpack.c.l.b16 %v524
      %v593 = vunpack.c.h.b16 %v524
      %v594 = vunpack.c.l.b16 %v525
      %v595 = vunpack.c.h.b16 %v525
      %v596 = vunpack.c.l.b16 %v526
      %v597 = vunpack.c.h.b16 %v526
      %v598 = vunpack.c.l.b16 %v527
      %v599 = vunpack.c.h.b16 %v527
      %v600 = vunpack.c.l.b16 %v528
      %v601 = vunpack.c.h.b16 %v528
      %v602 = vunpack.c.l.b16 %v529
      %v603 = vunpack.c.h.b16 %v529
      %v604 = vunpack.c.l.b16 %v530
      %v605 = vunpack.c.h.b16 %v530
      %v606 = vpack.c.b16 %v578, %v574
      %v607 = vpack.c.b16 %v579, %v575
      %v608 = vpack.c.b16 %v580, %v576
      %v609 = vpack.c.b16 %v581, %v577
      %v610 = vpack.c.b16 %v586, %v582
      %v611 = vpack.c.b16 %v587, %v583
      %v612 = vpack.c.b16 %v588, %v584
      %v613 = vpack.c.b16 %v589, %v585
      %v614 = vpack.c.b16 %v594, %v590
      %v615 = vpack.c.b16 %v595, %v591
      %v616 = vpack.c.b16 %v596, %v592
      %v617 = vpack.c.b16 %v597, %v593
      %v618 = vpack.c.b16 %v602, %v598
      %v619 = vpack.c.b16 %v603, %v599
      %v620 = vpack.c.b16 %v604, %v600
      %v621 = vpack.c.b16 %v605, %v601
      %vm638 = vcmask 523264
      %v640 = vsel %vm638, %v557, 0
      %642 = vmatprep.subr.bf16.mxu0 %v607
      %643 = vmatpush1.bf16.msra.mxu0 %v606
      %644 = vmatprep.subr.bf16.mxu0 %v611
      %645 = vmatpush1.bf16.msra.mxu0 %v610
      %646 = vmatprep.subr.bf16.mxu0 %v615
      %647 = vmatpush1.bf16.msra.mxu0 %v614
      %648 = vmatprep.subr.bf16.mxu0 %v619
      %649 = vmatpush1.bf16.msra.mxu0 %v618
      %650 = vmatprep.subr.bf16.mxu0 0
      %651 = vmatpush1.bf16.msra.mxu0 0
      %652 = vmatprep.subr.bf16.mxu0 0
      %653 = vmatpush1.bf16.msra.mxu0 0
      %654 = vmatprep.subr.bf16.mxu0 0
      %655 = vmatpush1.bf16.msra.mxu0 0
      %656 = vmatprep.subr.bf16.mxu0 0
      %657 = vmatpush1.bf16.msra.mxu0 0
      %658 = vmatprep.subr.bf16.mxu0 0
      %659 = vmatpush1.bf16.msra.mxu0 0
      %660 = vmatprep.subr.bf16.mxu0 0
      %661 = vmatpush1.bf16.msra.mxu0 0
      %662 = vmatprep.subr.bf16.mxu0 0
      %663 = vmatpush1.bf16.msra.mxu0 0
      %664 = vmatprep.subr.bf16.mxu0 0
      %665 = vmatpush1.bf16.msra.mxu0 0
      %666 = vmatprep.subr.bf16.mxu0 0
      %667 = vmatpush1.bf16.msra.mxu0 0
      %668 = vmatprep.subr.bf16.mxu0 0
      %669 = vmatpush1.bf16.msra.mxu0 0
      %670 = vmatprep.subr.bf16.mxu0 0
      %671 = vmatpush1.bf16.msra.mxu0 0
      %672 = vmatprep.subr.bf16.mxu0 0
      %673 = vmatpush1.bf16.msra.mxu0 0
      %674 = vmatprep.mubr.bf16.mxu0 0
      %675 = vmatmul.mubr.bf16.gmra.mrb[0].mxu0 %v640
      %v676 = vpop.f32.mrb[0].mxu0
      %v677 = vadd.f32 %v536, %v676
      %v678 = vpop.f32.mrb[0].mxu0
      %v679 = vadd.f32 %v540, %v678
      %v680 = vpop.f32.mrb[0].mxu0
      %v681 = vadd.f32 %v536, %v680
      %v682 = vpop.f32.mrb[0].mxu0
      %v683 = vadd.f32 %v540, %v682
      %684 = vdwg.mxu0
      %685 = vmatprep.subr.bf16.mxu0 %v609
      %686 = vmatpush1.bf16.msra.mxu0 %v608
      %687 = vmatprep.subr.bf16.mxu0 %v613
      %688 = vmatpush1.bf16.msra.mxu0 %v612
      %689 = vmatprep.subr.bf16.mxu0 %v617
      %690 = vmatpush1.bf16.msra.mxu0 %v616
      %691 = vmatprep.subr.bf16.mxu0 %v621
      %692 = vmatpush1.bf16.msra.mxu0 %v620
      %693 = vmatprep.subr.bf16.mxu0 0
      %694 = vmatpush1.bf16.msra.mxu0 0
      %695 = vmatprep.subr.bf16.mxu0 0
      %696 = vmatpush1.bf16.msra.mxu0 0
      %697 = vmatprep.subr.bf16.mxu0 0
      %698 = vmatpush1.bf16.msra.mxu0 0
      %699 = vmatprep.subr.bf16.mxu0 0
      %700 = vmatpush1.bf16.msra.mxu0 0
      %701 = vmatprep.subr.bf16.mxu0 0
      %702 = vmatpush1.bf16.msra.mxu0 0
      %703 = vmatprep.subr.bf16.mxu0 0
      %704 = vmatpush1.bf16.msra.mxu0 0
      %705 = vmatprep.subr.bf16.mxu0 0
      %706 = vmatpush1.bf16.msra.mxu0 0
      %707 = vmatprep.subr.bf16.mxu0 0
      %708 = vmatpush1.bf16.msra.mxu0 0
      %709 = vmatprep.subr.bf16.mxu0 0
      %710 = vmatpush1.bf16.msra.mxu0 0
      %711 = vmatprep.subr.bf16.mxu0 0
      %712 = vmatpush1.bf16.msra.mxu0 0
      %713 = vmatprep.subr.bf16.mxu0 0
      %714 = vmatpush1.bf16.msra.mxu0 0
      %715 = vmatprep.subr.bf16.mxu0 0
      %716 = vmatpush1.bf16.msra.mxu0 0
      %717 = vmatprep.mubr.bf16.mxu0 0
      %718 = vmatmul.mubr.bf16.gmra.mrb[0].mxu0 %v640
      %v719 = vpop.f32.mrb[0].mxu0
      %v720 = vadd.f32 %v544, %v719
      %v721 = vpop.f32.mrb[0].mxu0
      %v722 = vadd.f32 %v548, %v721
      %v723 = vpop.f32.mrb[0].mxu0
      %v724 = vadd.f32 %v544, %v723
      %v725 = vpop.f32.mrb[0].mxu0
      %v726 = vadd.f32 %v548, %v725
      %727 = vdwg.mxu0
      %v728 = vmax.f32 %v677, 0.0
      %v729 = vmax.f32 %v679, 0.0
      %v730 = vmax.f32 %v720, 0.0
      %v731 = vmax.f32 %v722, 0.0
      %v732 = vmax.f32 %v681, 0.0
      %v733 = vmax.f32 %v683, 0.0
      %v734 = vmax.f32 %v724, 0.0
      %v735 = vmax.f32 %v726, 0.0
      %v736 = vpack.c.bf16 %v732, %v728
      %v737 = vpack.c.bf16 %v733, %v729
      %v738 = vpack.c.bf16 %v734, %v730
      %v739 = vpack.c.bf16 %v735, %v731
      %v740 = vld [vmem:[%s3] sm:$0xff]
      %v741 = vld [vmem:[%s3 + $0x8] sm:$0xff]
      %v742 = vld [vmem:[%s3 + $0x10] sm:$0xff]
      %v743 = vld [vmem:[%s3 + $0x18] sm:$0xff]
      %v744 = vld [vmem:[%s3 + $0x20] sm:$0xff]
      %v745 = vld [vmem:[%s3 + $0x28] sm:$0xff]
      %v746 = vld [vmem:[%s3 + $0x30] sm:$0xff]
      %v747 = vld [vmem:[%s3 + $0x38] sm:$0xff]
      %v748 = vld [vmem:[%s3 + $0x40] sm:$0xff]
      %v749 = vld [vmem:[%s3 + $0x48] sm:$0xff]
      %v750 = vld [vmem:[%s3 + $0x50] sm:$0xff]
      %v751 = vld [vmem:[%s3 + $0x58] sm:$0xff]
      %v752 = vld [vmem:[%s3 + $0x60] sm:$0xff]
      %v753 = vld [vmem:[%s3 + $0x68] sm:$0xff]
      %v754 = vld [vmem:[%s3 + $0x70] sm:$0xff]
      %v755 = vld [vmem:[%s3 + $0x78] sm:$0xff]
      %v756 = vld [vmem:[%s3 + $0x80] sm:$0xff]
      %v757 = vld [vmem:[%s3 + $0x88] sm:$0xff]
      %v758 = vld [vmem:[%s3 + $0x90] sm:$0xff]
      %v759 = vld [vmem:[%s3 + $0x98] sm:$0xff]
      %v760 = vld [vmem:[%s3 + $0xa0] sm:$0xff]
      %v761 = vld [vmem:[%s3 + $0xa8] sm:$0xff]
      %v762 = vld [vmem:[%s3 + $0xb0] sm:$0xff]
      %v763 = vld [vmem:[%s3 + $0xb8] sm:$0xff]
      %v764 = vld [vmem:[%s3 + $0xc0] sm:$0xff]
      %v765 = vld [vmem:[%s3 + $0xc8] sm:$0xff]
      %v766 = vld [vmem:[%s3 + $0xd0] sm:$0xff]
      %v767 = vld [vmem:[%s3 + $0xd8] sm:$0xff]
      %v768 = vld [vmem:[%s3 + $0xe0] sm:$0xff]
      %v769 = vld [vmem:[%s3 + $0xe8] sm:$0xff]
      %v770 = vld [vmem:[%s3 + $0xf0] sm:$0xff]
      %v771 = vld [vmem:[%s3 + $0xf8] sm:$0xff]
      %v772 = vld [vmem:[%s3 + $0x100] sm:$0xff]
      %v773 = vld [vmem:[%s3 + $0x108] sm:$0xff]
      %v774 = vld [vmem:[%s3 + $0x110] sm:$0xff]
      %v775 = vld [vmem:[%s3 + $0x118] sm:$0xff]
      %v776 = vld [vmem:[%s3 + $0x120] sm:$0xff]
      %v777 = vld [vmem:[%s3 + $0x128] sm:$0xff]
      %v778 = vld [vmem:[%s3 + $0x130] sm:$0xff]
      %v779 = vld [vmem:[%s3 + $0x138] sm:$0xff]
      %v780 = vld [vmem:[%s3 + $0x140] sm:$0xff]
      %v781 = vld [vmem:[%s3 + $0x148] sm:$0xff]
      %v782 = vld [vmem:[%s3 + $0x150] sm:$0xff]
      %v783 = vld [vmem:[%s3 + $0x158] sm:$0xff]
      %v784 = vld [vmem:[%s3 + $0x160] sm:$0xff]
      %v785 = vld [vmem:[%s3 + $0x168] sm:$0xff]
      %v786 = vld [vmem:[%s3 + $0x170] sm:$0xff]
      %v787 = vld [vmem:[%s3 + $0x178] sm:$0xff]
      %v788 = vld [vmem:[%s3 + $0x180] sm:$0xff]
      %v789 = vld [vmem:[%s3 + $0x188] sm:$0xff]
      %v790 = vld [vmem:[%s3 + $0x190] sm:$0xff]
      %v791 = vld [vmem:[%s3 + $0x198] sm:$0xff]
      %v792 = vld [vmem:[%s3 + $0x1a0] sm:$0xff]
      %v793 = vld [vmem:[%s3 + $0x1a8] sm:$0xff]
      %v794 = vld [vmem:[%s3 + $0x1b0] sm:$0xff]
      %v795 = vld [vmem:[%s3 + $0x1b8] sm:$0xff]
      %v796 = vld [vmem:[%s3 + $0x1c0] sm:$0xff]
      %v797 = vld [vmem:[%s3 + $0x1c8] sm:$0xff]
      %v798 = vld [vmem:[%s3 + $0x1d0] sm:$0xff]
      %v799 = vld [vmem:[%s3 + $0x1d8] sm:$0xff]
      %v800 = vld [vmem:[%s3 + $0x1e0] sm:$0xff]
      %v801 = vld [vmem:[%s3 + $0x1e8] sm:$0xff]
      %v802 = vld [vmem:[%s3 + $0x1f0] sm:$0x33]
      %v803 = vld [vmem:[%s4] sm:$0x3]
      %v805 = vlaneseq
      %v806 = vshrl.u32 %v805, 7
      %v807 = vsub.s32 0, %v806
      %v808 = vrot.slane %v803, %v807
      %v809 = vlaneseq
      %v810 = vshrl.u32 %v809, 7
      %v811 = vsub.s32 1, %v810
      %v812 = vrot.slane %v803, %v811
      %v878 = vunpack.c.l.b16 %v740
      %v879 = vunpack.c.h.b16 %v740
      %v880 = vunpack.c.l.b16 %v741
      %v881 = vunpack.c.h.b16 %v741
      %v882 = vunpack.c.l.b16 %v742
      %v883 = vunpack.c.h.b16 %v742
      %v884 = vunpack.c.l.b16 %v743
      %v885 = vunpack.c.h.b16 %v743
      %v886 = vunpack.c.l.b16 %v744
      %v887 = vunpack.c.h.b16 %v744
      %v888 = vunpack.c.l.b16 %v745
      %v889 = vunpack.c.h.b16 %v745
      %v890 = vunpack.c.l.b16 %v746
      %v891 = vunpack.c.h.b16 %v746
      %v892 = vunpack.c.l.b16 %v747
      %v893 = vunpack.c.h.b16 %v747
      %v894 = vunpack.c.l.b16 %v748
      %v895 = vunpack.c.h.b16 %v748
      %v896 = vunpack.c.l.b16 %v749
      %v897 = vunpack.c.h.b16 %v749
      %v898 = vunpack.c.l.b16 %v750
      %v899 = vunpack.c.h.b16 %v750
      %v900 = vunpack.c.l.b16 %v751
      %v901 = vunpack.c.h.b16 %v751
      %v902 = vunpack.c.l.b16 %v752
      %v903 = vunpack.c.h.b16 %v752
      %v904 = vunpack.c.l.b16 %v753
      %v905 = vunpack.c.h.b16 %v753
      %v906 = vunpack.c.l.b16 %v754
      %v907 = vunpack.c.h.b16 %v754
      %v908 = vunpack.c.l.b16 %v755
      %v909 = vunpack.c.h.b16 %v755
      %v910 = vunpack.c.l.b16 %v756
      %v911 = vunpack.c.h.b16 %v756
      %v912 = vunpack.c.l.b16 %v757
      %v913 = vunpack.c.h.b16 %v757
      %v914 = vunpack.c.l.b16 %v758
      %v915 = vunpack.c.h.b16 %v758
      %v916 = vunpack.c.l.b16 %v759
      %v917 = vunpack.c.h.b16 %v759
      %v918 = vunpack.c.l.b16 %v760
      %v919 = vunpack.c.h.b16 %v760
      %v920 = vunpack.c.l.b16 %v761
      %v921 = vunpack.c.h.b16 %v761
      %v922 = vunpack.c.l.b16 %v762
      %v923 = vunpack.c.h.b16 %v762
      %v924 = vunpack.c.l.b16 %v763
      %v925 = vunpack.c.h.b16 %v763
      %v926 = vunpack.c.l.b16 %v764
      %v927 = vunpack.c.h.b16 %v764
      %v928 = vunpack.c.l.b16 %v765
      %v929 = vunpack.c.h.b16 %v765
      %v930 = vunpack.c.l.b16 %v766
      %v931 = vunpack.c.h.b16 %v766
      %v932 = vunpack.c.l.b16 %v767
      %v933 = vunpack.c.h.b16 %v767
      %v934 = vunpack.c.l.b16 %v768
      %v935 = vunpack.c.h.b16 %v768
      %v936 = vunpack.c.l.b16 %v769
      %v937 = vunpack.c.h.b16 %v769
      %v938 = vunpack.c.l.b16 %v770
      %v939 = vunpack.c.h.b16 %v770
      %v940 = vunpack.c.l.b16 %v771
      %v941 = vunpack.c.h.b16 %v771
      %v942 = vunpack.c.l.b16 %v772
      %v943 = vunpack.c.h.b16 %v772
      %v944 = vunpack.c.l.b16 %v773
      %v945 = vunpack.c.h.b16 %v773
      %v946 = vunpack.c.l.b16 %v774
      %v947 = vunpack.c.h.b16 %v774
      %v948 = vunpack.c.l.b16 %v775
      %v949 = vunpack.c.h.b16 %v775
      %v950 = vunpack.c.l.b16 %v776
      %v951 = vunpack.c.h.b16 %v776
      %v952 = vunpack.c.l.b16 %v777
      %v953 = vunpack.c.h.b16 %v777
      %v954 = vunpack.c.l.b16 %v778
      %v955 = vunpack.c.h.b16 %v778
      %v956 = vunpack.c.l.b16 %v779
      %v957 = vunpack.c.h.b16 %v779
      %v958 = vunpack.c.l.b16 %v780
      %v959 = vunpack.c.h.b16 %v780
      %v960 = vunpack.c.l.b16 %v781
      %v961 = vunpack.c.h.b16 %v781
      %v962 = vunpack.c.l.b16 %v782
      %v963 = vunpack.c.h.b16 %v782
      %v964 = vunpack.c.l.b16 %v783
      %v965 = vunpack.c.h.b16 %v783
      %v966 = vunpack.c.l.b16 %v784
      %v967 = vunpack.c.h.b16 %v784
      %v968 = vunpack.c.l.b16 %v785
      %v969 = vunpack.c.h.b16 %v785
      %v970 = vunpack.c.l.b16 %v786
      %v971 = vunpack.c.h.b16 %v786
      %v972 = vunpack.c.l.b16 %v787
      %v973 = vunpack.c.h.b16 %v787
      %v974 = vunpack.c.l.b16 %v788
      %v975 = vunpack.c.h.b16 %v788
      %v976 = vunpack.c.l.b16 %v789
      %v977 = vunpack.c.h.b16 %v789
      %v978 = vunpack.c.l.b16 %v790
      %v979 = vunpack.c.h.b16 %v790
      %v980 = vunpack.c.l.b16 %v791
      %v981 = vunpack.c.h.b16 %v791
      %v982 = vunpack.c.l.b16 %v792
      %v983 = vunpack.c.h.b16 %v792
      %v984 = vunpack.c.l.b16 %v793
      %v985 = vunpack.c.h.b16 %v793
      %v986 = vunpack.c.l.b16 %v794
      %v987 = vunpack.c.h.b16 %v794
      %v988 = vunpack.c.l.b16 %v795
      %v989 = vunpack.c.h.b16 %v795
      %v990 = vunpack.c.l.b16 %v796
      %v991 = vunpack.c.h.b16 %v796
      %v992 = vunpack.c.l.b16 %v797
      %v993 = vunpack.c.h.b16 %v797
      %v994 = vunpack.c.l.b16 %v798
      %v995 = vunpack.c.h.b16 %v798
      %v996 = vunpack.c.l.b16 %v799
      %v997 = vunpack.c.h.b16 %v799
      %v998 = vunpack.c.l.b16 %v800
      %v999 = vunpack.c.h.b16 %v800
      %v1000 = vunpack.c.l.b16 %v801
      %v1001 = vunpack.c.h.b16 %v801
      %v1002 = vunpack.c.l.b16 %v802
      %v1003 = vunpack.c.h.b16 %v802
      %v1004 = vpack.c.b16 %v880, %v878
      %v1005 = vpack.c.b16 %v881, %v879
      %v1006 = vpack.c.b16 %v884, %v882
      %v1007 = vpack.c.b16 %v885, %v883
      %v1008 = vpack.c.b16 %v888, %v886
      %v1009 = vpack.c.b16 %v889, %v887
      %v1010 = vpack.c.b16 %v892, %v890
      %v1011 = vpack.c.b16 %v893, %v891
      %v1012 = vpack.c.b16 %v896, %v894
      %v1013 = vpack.c.b16 %v897, %v895
      %v1014 = vpack.c.b16 %v900, %v898
      %v1015 = vpack.c.b16 %v901, %v899
      %v1016 = vpack.c.b16 %v904, %v902
      %v1017 = vpack.c.b16 %v905, %v903
      %v1018 = vpack.c.b16 %v908, %v906
      %v1019 = vpack.c.b16 %v909, %v907
      %v1020 = vpack.c.b16 %v912, %v910
      %v1021 = vpack.c.b16 %v913, %v911
      %v1022 = vpack.c.b16 %v916, %v914
      %v1023 = vpack.c.b16 %v917, %v915
      %v1024 = vpack.c.b16 %v920, %v918
      %v1025 = vpack.c.b16 %v921, %v919
      %v1026 = vpack.c.b16 %v924, %v922
      %v1027 = vpack.c.b16 %v925, %v923
      %v1028 = vpack.c.b16 %v928, %v926
      %v1029 = vpack.c.b16 %v929, %v927
      %v1030 = vpack.c.b16 %v932, %v930
      %v1031 = vpack.c.b16 %v933, %v931
      %v1032 = vpack.c.b16 %v936, %v934
      %v1033 = vpack.c.b16 %v937, %v935
      %v1034 = vpack.c.b16 %v940, %v938
      %v1035 = vpack.c.b16 %v941, %v939
      %v1036 = vpack.c.b16 %v944, %v942
      %v1037 = vpack.c.b16 %v945, %v943
      %v1038 = vpack.c.b16 %v948, %v946
      %v1039 = vpack.c.b16 %v949, %v947
      %v1040 = vpack.c.b16 %v952, %v950
      %v1041 = vpack.c.b16 %v953, %v951
      %v1042 = vpack.c.b16 %v956, %v954
      %v1043 = vpack.c.b16 %v957, %v955
      %v1044 = vpack.c.b16 %v960, %v958
      %v1045 = vpack.c.b16 %v961, %v959
      %v1046 = vpack.c.b16 %v964, %v962
      %v1047 = vpack.c.b16 %v965, %v963
      %v1048 = vpack.c.b16 %v968, %v966
      %v1049 = vpack.c.b16 %v969, %v967
      %v1050 = vpack.c.b16 %v972, %v970
      %v1051 = vpack.c.b16 %v973, %v971
      %v1052 = vpack.c.b16 %v976, %v974
      %v1053 = vpack.c.b16 %v977, %v975
      %v1054 = vpack.c.b16 %v980, %v978
      %v1055 = vpack.c.b16 %v981, %v979
      %v1056 = vpack.c.b16 %v984, %v982
      %v1057 = vpack.c.b16 %v985, %v983
      %v1058 = vpack.c.b16 %v988, %v986
      %v1059 = vpack.c.b16 %v989, %v987
      %v1060 = vpack.c.b16 %v992, %v990
      %v1061 = vpack.c.b16 %v993, %v991
      %v1062 = vpack.c.b16 %v996, %v994
      %v1063 = vpack.c.b16 %v997, %v995
      %v1064 = vpack.c.b16 %v1000, %v998
      %v1065 = vpack.c.b16 %v1001, %v999
      %v1066 = vpack.c.b16 %v1002, %v1002
      %v1067 = vpack.c.b16 %v1003, %v1003
      %vm1130 = vcmask 949248
      %v1132 = vsel %vm1130, %v739, 0
      %vm1134 = vcmask 1041408
      %v1136 = vsel %vm1134, %v1066, 0
      %v1139 = vsel %vm1134, %v1067, 0
      %1141 = vmatprep.subr.bf16.mxu0 %v1005
      %1142 = vmatpush1.bf16.msra.mxu0 %v1004
      %1143 = vmatprep.subr.bf16.mxu0 %v1007
      %1144 = vmatpush1.bf16.msra.mxu0 %v1006
      %1145 = vmatprep.subr.bf16.mxu0 %v1009
      %1146 = vmatpush1.bf16.msra.mxu0 %v1008
      %1147 = vmatprep.subr.bf16.mxu0 %v1011
      %1148 = vmatpush1.bf16.msra.mxu0 %v1010
      %1149 = vmatprep.subr.bf16.mxu0 %v1013
      %1150 = vmatpush1.bf16.msra.mxu0 %v1012
      %1151 = vmatprep.subr.bf16.mxu0 %v1015
      %1152 = vmatpush1.bf16.msra.mxu0 %v1014
      %1153 = vmatprep.subr.bf16.mxu0 %v1017
      %1154 = vmatpush1.bf16.msra.mxu0 %v1016
      %1155 = vmatprep.subr.bf16.mxu0 %v1019
      %1156 = vmatpush1.bf16.msra.mxu0 %v1018
      %1157 = vmatprep.subr.bf16.mxu0 %v1021
      %1158 = vmatpush1.bf16.msra.mxu0 %v1020
      %1159 = vmatprep.subr.bf16.mxu0 %v1023
      %1160 = vmatpush1.bf16.msra.mxu0 %v1022
      %1161 = vmatprep.subr.bf16.mxu0 %v1025
      %1162 = vmatpush1.bf16.msra.mxu0 %v1024
      %1163 = vmatprep.subr.bf16.mxu0 %v1027
      %1164 = vmatpush1.bf16.msra.mxu0 %v1026
      %1165 = vmatprep.subr.bf16.mxu0 %v1029
      %1166 = vmatpush1.bf16.msra.mxu0 %v1028
      %1167 = vmatprep.subr.bf16.mxu0 %v1031
      %1168 = vmatpush1.bf16.msra.mxu0 %v1030
      %1169 = vmatprep.subr.bf16.mxu0 %v1033
      %1170 = vmatpush1.bf16.msra.mxu0 %v1032
      %1171 = vmatprep.subr.bf16.mxu0 %v1035
      %1172 = vmatpush1.bf16.msra.mxu0 %v1034
      %1173 = vmatprep.mubr.bf16.mxu0 %v737
      %1174 = vmatmul.mubr.bf16.gmra.mrb[0].mxu0 %v736
      %v1175 = vpop.f32.mrb[0].mxu0
      %v1176 = vadd.f32 %v808, %v1175
      %v1177 = vpop.f32.mrb[0].mxu0
      %v1178 = vadd.f32 %v812, %v1177
      %v1179 = vpop.f32.mrb[0].mxu0
      %v1180 = vadd.f32 %v808, %v1179
      %v1181 = vpop.f32.mrb[0].mxu0
      %v1182 = vadd.f32 %v812, %v1181
      %1183 = vdwg.mxu0
      %1184 = vmatprep.subr.bf16.mxu0 %v1037
      %1185 = vmatpush1.bf16.msra.mxu0 %v1036
      %1186 = vmatprep.subr.bf16.mxu0 %v1039
      %1187 = vmatpush1.bf16.msra.mxu0 %v1038
      %1188 = vmatprep.subr.bf16.mxu0 %v1041
      %1189 = vmatpush1.bf16.msra.mxu0 %v1040
      %1190 = vmatprep.subr.bf16.mxu0 %v1043
      %1191 = vmatpush1.bf16.msra.mxu0 %v1042
      %1192 = vmatprep.subr.bf16.mxu0 %v1045
      %1193 = vmatpush1.bf16.msra.mxu0 %v1044
      %1194 = vmatprep.subr.bf16.mxu0 %v1047
      %1195 = vmatpush1.bf16.msra.mxu0 %v1046
      %1196 = vmatprep.subr.bf16.mxu0 %v1049
      %1197 = vmatpush1.bf16.msra.mxu0 %v1048
      %1198 = vmatprep.subr.bf16.mxu0 %v1051
      %1199 = vmatpush1.bf16.msra.mxu0 %v1050
      %1200 = vmatprep.subr.bf16.mxu0 %v1053
      %1201 = vmatpush1.bf16.msra.mxu0 %v1052
      %1202 = vmatprep.subr.bf16.mxu0 %v1055
      %1203 = vmatpush1.bf16.msra.mxu0 %v1054
      %1204 = vmatprep.subr.bf16.mxu0 %v1057
      %1205 = vmatpush1.bf16.msra.mxu0 %v1056
      %1206 = vmatprep.subr.bf16.mxu0 %v1059
      %1207 = vmatpush1.bf16.msra.mxu0 %v1058
      %1208 = vmatprep.subr.bf16.mxu0 %v1061
      %1209 = vmatpush1.bf16.msra.mxu0 %v1060
      %1210 = vmatprep.subr.bf16.mxu0 %v1063
      %1211 = vmatpush1.bf16.msra.mxu0 %v1062
      %1212 = vmatprep.subr.bf16.mxu0 %v1065
      %1213 = vmatpush1.bf16.msra.mxu0 %v1064
      %1214 = vmatprep.subr.bf16.mxu0 %v1139
      %1215 = vmatpush1.bf16.msra.mxu0 %v1136
      %1216 = vmatprep.mubr.bf16.mxu0 %v1132
      %1217 = vmatmul.mubr.bf16.gmra.mrb[0].mxu0 %v738
      %v1218 = vpop.f32.mrb[0].mxu0
      %v1219 = vadd.f32 %v1176, %v1218
      %v1220 = vpop.f32.mrb[0].mxu0
      %v1221 = vadd.f32 %v1178, %v1220
      %v1222 = vpop.f32.mrb[0].mxu0
      %v1223 = vadd.f32 %v1180, %v1222
      %v1224 = vpop.f32.mrb[0].mxu0
      %v1225 = vadd.f32 %v1182, %v1224
      %1226 = vdwg.mxu0
      %v1227 = vmax.f32 %v1219, 0.0
      %v1228 = vmax.f32 %v1221, 0.0
      %v1229 = vmax.f32 %v1223, 0.0
      %v1230 = vmax.f32 %v1225, 0.0
      %v1231 = vpack.c.bf16 %v1229, %v1227
      %v1232 = vpack.c.bf16 %v1230, %v1228
      %v1233 = vld [vmem:[%s5] sm:$0xf]
      %v1234 = vld [vmem:[%s5 + $0x4] sm:$0xf]
      %v1235 = vld [vmem:[%s5 + $0x8] sm:$0xf]
      %v1236 = vld [vmem:[%s5 + $0xc] sm:$0xf]
      %v1237 = vld [vmem:[%s5 + $0x10] sm:$0xf]
      %v1238 = vld [vmem:[%s5 + $0x14] sm:$0xf]
      %v1239 = vld [vmem:[%s5 + $0x18] sm:$0xf]
      %v1240 = vld [vmem:[%s5 + $0x1c] sm:$0xf]
      %v1241 = vld [vmem:[%s5 + $0x20] sm:$0xf]
      %v1242 = vld [vmem:[%s5 + $0x24] sm:$0xf]
      %v1243 = vld [vmem:[%s5 + $0x28] sm:$0xf]
      %v1244 = vld [vmem:[%s5 + $0x2c] sm:$0xf]
      %v1245 = vld [vmem:[%s5 + $0x30] sm:$0xf]
      %v1246 = vld [vmem:[%s5 + $0x34] sm:$0xf]
      %v1247 = vld [vmem:[%s5 + $0x38] sm:$0xf]
      %v1248 = vld [vmem:[%s5 + $0x3c] sm:$0xf]
      %v1249 = vld [vmem:[%s5 + $0x40] sm:$0xf]
      %v1250 = vld [vmem:[%s5 + $0x44] sm:$0xf]
      %v1251 = vld [vmem:[%s5 + $0x48] sm:$0xf]
      %v1252 = vld [vmem:[%s5 + $0x4c] sm:$0xf]
      %v1253 = vld [vmem:[%s5 + $0x50] sm:$0xf]
      %v1254 = vld [vmem:[%s5 + $0x54] sm:$0xf]
      %v1255 = vld [vmem:[%s5 + $0x58] sm:$0xf]
      %v1256 = vld [vmem:[%s5 + $0x5c] sm:$0xf]
      %v1257 = vld [vmem:[%s5 + $0x60] sm:$0xf]
      %v1258 = vld [vmem:[%s6] sm:$0x1]
      %v1260 = vlaneseq
      %v1261 = vshrl.u32 %v1260, 7
      %v1262 = vsub.s32 0, %v1261
      %v1263 = vrot.slane %v1258, %v1262
      %v1290 = vunpack.c.l.b16 %v1233
      %v1291 = vunpack.c.l.b16 %v1234
      %v1292 = vunpack.c.l.b16 %v1235
      %v1293 = vunpack.c.l.b16 %v1236
      %v1294 = vunpack.c.l.b16 %v1237
      %v1295 = vunpack.c.l.b16 %v1238
      %v1296 = vunpack.c.l.b16 %v1239
      %v1297 = vunpack.c.l.b16 %v1240
      %v1298 = vunpack.c.l.b16 %v1241
      %v1299 = vunpack.c.l.b16 %v1242
      %v1300 = vunpack.c.l.b16 %v1243
      %v1301 = vunpack.c.l.b16 %v1244
      %v1302 = vunpack.c.l.b16 %v1245
      %v1303 = vunpack.c.l.b16 %v1246
      %v1304 = vunpack.c.l.b16 %v1247
      %v1305 = vunpack.c.l.b16 %v1248
      %v1306 = vunpack.c.l.b16 %v1249
      %v1307 = vunpack.c.l.b16 %v1250
      %v1308 = vunpack.c.l.b16 %v1251
      %v1309 = vunpack.c.l.b16 %v1252
      %v1310 = vunpack.c.l.b16 %v1253
      %v1311 = vunpack.c.l.b16 %v1254
      %v1312 = vunpack.c.l.b16 %v1255
      %v1313 = vunpack.c.l.b16 %v1256
      %v1314 = vunpack.c.l.b16 %v1257
      %v1315 = vpack.c.b16 %v1291, %v1290
      %v1316 = vpack.c.b16 %v1293, %v1292
      %v1317 = vpack.c.b16 %v1295, %v1294
      %v1318 = vpack.c.b16 %v1297, %v1296
      %v1319 = vpack.c.b16 %v1299, %v1298
      %v1320 = vpack.c.b16 %v1301, %v1300
      %v1321 = vpack.c.b16 %v1303, %v1302
      %v1322 = vpack.c.b16 %v1305, %v1304
      %v1323 = vpack.c.b16 %v1307, %v1306
      %v1324 = vpack.c.b16 %v1309, %v1308
      %v1325 = vpack.c.b16 %v1311, %v1310
      %v1326 = vpack.c.b16 %v1313, %v1312
      %v1327 = vpack.c.b16 %v1314, %v1314
      %vm1340 = vcmask 588800
      %v1342 = vsel %vm1340, %v1232, 0
      %vm1344 = vcmask 1043456
      %v1346 = vsel %vm1344, %v1327, 0
      %1348 = vmatprep.subr.bf16.mxu0 0
      %1349 = vmatpush1.bf16.msra.mxu0 %v1315
      %1350 = vmatprep.subr.bf16.mxu0 0
      %1351 = vmatpush1.bf16.msra.mxu0 %v1316
      %1352 = vmatprep.subr.bf16.mxu0 0
      %1353 = vmatpush1.bf16.msra.mxu0 %v1317
      %1354 = vmatprep.subr.bf16.mxu0 0
      %1355 = vmatpush1.bf16.msra.mxu0 %v1318
      %1356 = vmatprep.subr.bf16.mxu0 0
      %1357 = vmatpush1.bf16.msra.mxu0 %v1319
      %1358 = vmatprep.subr.bf16.mxu0 0
      %1359 = vmatpush1.bf16.msra.mxu0 %v1320
      %1360 = vmatprep.subr.bf16.mxu0 0
      %1361 = vmatpush1.bf16.msra.mxu0 %v1321
      %1362 = vmatprep.subr.bf16.mxu0 0
      %1363 = vmatpush1.bf16.msra.mxu0 %v1322
      %1364 = vmatprep.subr.bf16.mxu0 0
      %1365 = vmatpush1.bf16.msra.mxu0 %v1323
      %1366 = vmatprep.subr.bf16.mxu0 0
      %1367 = vmatpush1.bf16.msra.mxu0 %v1324
      %1368 = vmatprep.subr.bf16.mxu0 0
      %1369 = vmatpush1.bf16.msra.mxu0 %v1325
      %1370 = vmatprep.subr.bf16.mxu0 0
      %1371 = vmatpush1.bf16.msra.mxu0 %v1326
      %1372 = vmatprep.subr.bf16.mxu0 0
      %1373 = vmatpush1.bf16.msra.mxu0 %v1346
      %1374 = vmatprep.subr.bf16.mxu0 0
      %1375 = vmatpush1.bf16.msra.mxu0 0
      %1376 = vmatprep.subr.bf16.mxu0 0
      %1377 = vmatpush1.bf16.msra.mxu0 0
      %1378 = vmatprep.subr.bf16.mxu0 0
      %1379 = vmatpush1.bf16.msra.mxu0 0
      %1380 = vmatprep.mubr.bf16.mxu0 %v1342
      %1381 = vmatmul.mubr.bf16.gmra.mrb[0].mxu0 %v1231
      %v1382 = vpop.f32.mrb[0].mxu0
      %v1383 = vadd.f32 %v1263, %v1382
      %v1384 = vpop.f32.mrb[0].mxu0
      %v1385 = vpop.f32.mrb[0].mxu0
      %v1386 = vadd.f32 %v1263, %v1385
      %v1387 = vpop.f32.mrb[0].mxu0
      %1388 = vdwg.mxu0
      %v1389 = vsub.f32 %v1386, %v1383
      %v1390 = vmax.f32 %v1386, %v1383
      %v1391 = vand.u32 2147483647, %v1389
      %v1392 = vsub.f32 0.0, %v1391
      %v1393 = vmul.f32 %v1392, 1.442695
      %v1394 = vpow.pop %v1393
      %v1395 = vadd.f32 %v1394, 1.0
      %v1396 = vlog2.pop %v1395
      %v1397 = vmul.f32 %v1396, 0.6931472
      %v1398 = vadd.f32 %v1390, %v1397
      %v1399 = vmul.f32 %v1398, 0.5
      %v1400 = vmul.f32 %v1399, 1.442695
      %v1401 = vpow.pop %v1400
      %v1402 = vld [vmem:[%s507] sm:$0xff]
      %1404 = vrot.lane.b32.xlu0 %v1402, 8
      %v1405 = vpop.permute.xlu0 %1404
      %v1407 = vmul.f32 %v1401, %v1405
      %1409 = vrot.lane.b32.xlu0 %v1407, 120
      %v1410 = vpop.permute.xlu0 %1409
      %v1412 = vadd.f32 %v1389, %v1410
      %v1413 = vld [vmem:[%s7] sm:$0xf]
      %v1414 = vld [vmem:[%s7 + $0x4] sm:$0xf]
      %v1415 = vld [vmem:[%s7 + $0x8] sm:$0xf]
      %v1416 = vld [vmem:[%s7 + $0xc] sm:$0xf]
      %v1417 = vld [vmem:[%s7 + $0x10] sm:$0xf]
      %v1418 = vld [vmem:[%s7 + $0x14] sm:$0xf]
      %v1419 = vld [vmem:[%s7 + $0x18] sm:$0xf]
      %v1420 = vld [vmem:[%s7 + $0x1c] sm:$0xf]
      %v1421 = vpack.c.bf16 %v1412, %v1412
      %v1422 = vld [vmem:[%s8] sm:$0xf]
      %vm1423 = vcmask 64512
      %v1425 = vsel %vm1423, %v1421, 0
      %v1428 = vsel %vm1344, %v1422, 0
      %1430 = vmatprep.subr.bf16.mxu0 0
      %1431 = vmatpush1.bf16.msra.mxu0 %v1428
      %1432 = vmatprep.subr.bf16.mxu0 0
      %1433 = vmatpush1.bf16.msra.mxu0 0
      %1434 = vmatprep.subr.bf16.mxu0 0
      %1435 = vmatpush1.bf16.msra.mxu0 0
      %1436 = vmatprep.subr.bf16.mxu0 0
      %1437 = vmatpush1.bf16.msra.mxu0 0
      %1438 = vmatprep.subr.bf16.mxu0 0
      %1439 = vmatpush1.bf16.msra.mxu0 0
      %1440 = vmatprep.subr.bf16.mxu0 0
      %1441 = vmatpush1.bf16.msra.mxu0 0
      %1442 = vmatprep.subr.bf16.mxu0 0
      %1443 = vmatpush1.bf16.msra.mxu0 0
      %1444 = vmatprep.subr.bf16.mxu0 0
      %1445 = vmatpush1.bf16.msra.mxu0 0
      %1446 = vmatprep.subr.bf16.mxu0 0
      %1447 = vmatpush1.bf16.msra.mxu0 0
      %1448 = vmatprep.subr.bf16.mxu0 0
      %1449 = vmatpush1.bf16.msra.mxu0 0
      %1450 = vmatprep.subr.bf16.mxu0 0
      %1451 = vmatpush1.bf16.msra.mxu0 0
      %1452 = vmatprep.subr.bf16.mxu0 0
      %1453 = vmatpush1.bf16.msra.mxu0 0
      %1454 = vmatprep.subr.bf16.mxu0 0
      %1455 = vmatpush1.bf16.msra.mxu0 0
      %1456 = vmatprep.subr.bf16.mxu0 0
      %1457 = vmatpush1.bf16.msra.mxu0 0
      %1458 = vmatprep.subr.bf16.mxu0 0
      %1459 = vmatpush1.bf16.msra.mxu0 0
      %1460 = vmatprep.subr.bf16.mxu0 0
      %1461 = vmatpush1.bf16.msra.mxu0 0
      %1462 = vmatprep.mubr.bf16.mxu0 0
      %1463 = vmatmul.mubr.bf16.gmra.mrb[0].mxu0 %v1425
      %v1464 = vpop.f32.mrb[0].mxu0
      %v1465 = vadd.f32 0.0, %v1464
      %v1466 = vpop.f32.mrb[0].mxu0
      %v1467 = vpop.f32.mrb[0].mxu0
      %v1468 = vpop.f32.mrb[0].mxu0
      %1469 = vdwg.mxu0
      %v1478 = vunpack.c.l.b16 %v1413
      %v1479 = vunpack.c.l.b16 %v1414
      %v1480 = vunpack.c.l.b16 %v1415
      %v1481 = vunpack.c.l.b16 %v1416
      %v1482 = vunpack.c.l.b16 %v1417
      %v1483 = vunpack.c.l.b16 %v1418
      %v1484 = vunpack.c.l.b16 %v1419
      %v1485 = vunpack.c.l.b16 %v1420
      %v1486 = vpack.c.b16 %v1479, %v1478
      %v1487 = vpack.c.b16 %v1481, %v1480
      %v1488 = vpack.c.b16 %v1483, %v1482
      %v1489 = vpack.c.b16 %v1485, %v1484
      %v1495 = vsel %vm638, %v513, 0
      %1497 = vmatprep.subr.bf16.mxu0 0
      %1498 = vmatpush1.bf16.msra.mxu0 %v1486
      %1499 = vmatprep.subr.bf16.mxu0 0
      %1500 = vmatpush1.bf16.msra.mxu0 %v1487
      %1501 = vmatprep.subr.bf16.mxu0 0
      %1502 = vmatpush1.bf16.msra.mxu0 %v1488
      %1503 = vmatprep.subr.bf16.mxu0 0
      %1504 = vmatpush1.bf16.msra.mxu0 %v1489
      %1505 = vmatprep.subr.bf16.mxu0 0
      %1506 = vmatpush1.bf16.msra.mxu0 0
      %1507 = vmatprep.subr.bf16.mxu0 0
      %1508 = vmatpush1.bf16.msra.mxu0 0
      %1509 = vmatprep.subr.bf16.mxu0 0
      %1510 = vmatpush1.bf16.msra.mxu0 0
      %1511 = vmatprep.subr.bf16.mxu0 0
      %1512 = vmatpush1.bf16.msra.mxu0 0
      %1513 = vmatprep.subr.bf16.mxu0 0
      %1514 = vmatpush1.bf16.msra.mxu0 0
      %1515 = vmatprep.subr.bf16.mxu0 0
      %1516 = vmatpush1.bf16.msra.mxu0 0
      %1517 = vmatprep.subr.bf16.mxu0 0
      %1518 = vmatpush1.bf16.msra.mxu0 0
      %1519 = vmatprep.subr.bf16.mxu0 0
      %1520 = vmatpush1.bf16.msra.mxu0 0
      %1521 = vmatprep.subr.bf16.mxu0 0
      %1522 = vmatpush1.bf16.msra.mxu0 0
      %1523 = vmatprep.subr.bf16.mxu0 0
      %1524 = vmatpush1.bf16.msra.mxu0 0
      %1525 = vmatprep.subr.bf16.mxu0 0
      %1526 = vmatpush1.bf16.msra.mxu0 0
      %1527 = vmatprep.subr.bf16.mxu0 0
      %1528 = vmatpush1.bf16.msra.mxu0 0
      %1529 = vmatprep.mubr.bf16.mxu0 0
      %1530 = vmatmul.mubr.bf16.gmra.mrb[0].mxu0 %v1495
      %v1531 = vpop.f32.mrb[0].mxu0
      %v1532 = vadd.f32 %v1465, %v1531
      %v1533 = vpop.f32.mrb[0].mxu0
      %v1534 = vpop.f32.mrb[0].mxu0
      %v1535 = vpop.f32.mrb[0].mxu0
      %1536 = vdwg.mxu0
      %v1537 = vld [vmem:[%s9] sm:$0x1]
      %v1539 = vlaneseq
      %v1540 = vshrl.u32 %v1539, 7
      %v1541 = vsub.s32 0, %v1540
      %v1542 = vrot.slane %v1537, %v1541
      %v1544 = vadd.f32 %v1532, %v1542
      %v1545 = vmax.f32 %v1544, 0.0
      %v1546 = vpack.c.bf16 %v1545, %v1545
      %v1547 = vld [vmem:[%s10] sm:$0xf]
      %v1548 = vld [vmem:[%s10 + $0x4] sm:$0xf]
      %v1549 = vld [vmem:[%s10 + $0x8] sm:$0xf]
      %v1550 = vld [vmem:[%s10 + $0xc] sm:$0xf]
      %v1551 = vld [vmem:[%s10 + $0x10] sm:$0xf]
      %v1552 = vld [vmem:[%s11] sm:$0x1]
      %v1554 = vlaneseq
      %v1555 = vshrl.u32 %v1554, 7
      %v1556 = vsub.s32 0, %v1555
      %v1557 = vrot.slane %v1552, %v1556
      %v1564 = vunpack.c.l.b16 %v1547
      %v1565 = vunpack.c.l.b16 %v1548
      %v1566 = vunpack.c.l.b16 %v1549
      %v1567 = vunpack.c.l.b16 %v1550
      %v1568 = vunpack.c.l.b16 %v1551
      %v1569 = vpack.c.b16 %v1565, %v1564
      %v1570 = vpack.c.b16 %v1567, %v1566
      %v1571 = vpack.c.b16 %v1568, %v1568
      %vm1574 = vcmask 326656
      %v1576 = vsel %vm1574, %v1546, 0
      %v1579 = vsel %vm1344, %v1571, 0
      %1581 = vmatprep.subr.bf16.mxu0 0
      %1582 = vmatpush1.bf16.msra.mxu0 %v1569
      %1583 = vmatprep.subr.bf16.mxu0 0
      %1584 = vmatpush1.bf16.msra.mxu0 %v1570
      %1585 = vmatprep.subr.bf16.mxu0 0
      %1586 = vmatpush1.bf16.msra.mxu0 %v1579
      %1587 = vmatprep.subr.bf16.mxu0 0
      %1588 = vmatpush1.bf16.msra.mxu0 0
      %1589 = vmatprep.subr.bf16.mxu0 0
      %1590 = vmatpush1.bf16.msra.mxu0 0
      %1591 = vmatprep.subr.bf16.mxu0 0
      %1592 = vmatpush1.bf16.msra.mxu0 0
      %1593 = vmatprep.subr.bf16.mxu0 0
      %1594 = vmatpush1.bf16.msra.mxu0 0
      %1595 = vmatprep.subr.bf16.mxu0 0
      %1596 = vmatpush1.bf16.msra.mxu0 0
      %1597 = vmatprep.subr.bf16.mxu0 0
      %1598 = vmatpush1.bf16.msra.mxu0 0
      %1599 = vmatprep.subr.bf16.mxu0 0
      %1600 = vmatpush1.bf16.msra.mxu0 0
      %1601 = vmatprep.subr.bf16.mxu0 0
      %1602 = vmatpush1.bf16.msra.mxu0 0
      %1603 = vmatprep.subr.bf16.mxu0 0
      %1604 = vmatpush1.bf16.msra.mxu0 0
      %1605 = vmatprep.subr.bf16.mxu0 0
      %1606 = vmatpush1.bf16.msra.mxu0 0
      %1607 = vmatprep.subr.bf16.mxu0 0
      %1608 = vmatpush1.bf16.msra.mxu0 0
      %1609 = vmatprep.subr.bf16.mxu0 0
      %1610 = vmatpush1.bf16.msra.mxu0 0
      %1611 = vmatprep.subr.bf16.mxu0 0
      %1612 = vmatpush1.bf16.msra.mxu0 0
      %1613 = vmatprep.mubr.bf16.mxu0 0
      %1614 = vmatmul.mubr.bf16.gmra.mrb[0].mxu0 %v1576
      %v1615 = vpop.f32.mrb[0].mxu0
      %v1616 = vadd.f32 %v1557, %v1615
      %v1617 = vpop.f32.mrb[0].mxu0
      %v1618 = vpop.f32.mrb[0].mxu0
      %v1619 = vpop.f32.mrb[0].mxu0
      %1620 = vdwg.mxu0
      %v1621 = vmax.f32 %v1616, 0.0
      %v1622 = vpack.c.bf16 %v1621, %v1621
      %v1624 = vsel %vm1574, %v1622, 0
      %1626 = vmatprep.subr.bf16.mxu0 0
      %1627 = vmatpush1.bf16.msra.mxu0 %v1569
      %1628 = vmatprep.subr.bf16.mxu0 0
      %1629 = vmatpush1.bf16.msra.mxu0 %v1570
      %1630 = vmatprep.subr.bf16.mxu0 0
      %1631 = vmatpush1.bf16.msra.mxu0 %v1579
      %1632 = vmatprep.subr.bf16.mxu0 0
      %1633 = vmatpush1.bf16.msra.mxu0 0
      %1634 = vmatprep.subr.bf16.mxu0 0
      %1635 = vmatpush1.bf16.msra.mxu0 0
      %1636 = vmatprep.subr.bf16.mxu0 0
      %1637 = vmatpush1.bf16.msra.mxu0 0
      %1638 = vmatprep.subr.bf16.mxu0 0
      %1639 = vmatpush1.bf16.msra.mxu0 0
      %1640 = vmatprep.subr.bf16.mxu0 0
      %1641 = vmatpush1.bf16.msra.mxu0 0
      %1642 = vmatprep.subr.bf16.mxu0 0
      %1643 = vmatpush1.bf16.msra.mxu0 0
      %1644 = vmatprep.subr.bf16.mxu0 0
      %1645 = vmatpush1.bf16.msra.mxu0 0
      %1646 = vmatprep.subr.bf16.mxu0 0
      %1647 = vmatpush1.bf16.msra.mxu0 0
      %1648 = vmatprep.subr.bf16.mxu0 0
      %1649 = vmatpush1.bf16.msra.mxu0 0
      %1650 = vmatprep.subr.bf16.mxu0 0
      %1651 = vmatpush1.bf16.msra.mxu0 0
      %1652 = vmatprep.subr.bf16.mxu0 0
      %1653 = vmatpush1.bf16.msra.mxu0 0
      %1654 = vmatprep.subr.bf16.mxu0 0
      %1655 = vmatpush1.bf16.msra.mxu0 0
      %1656 = vmatprep.subr.bf16.mxu0 0
      %1657 = vmatpush1.bf16.msra.mxu0 0
      %1658 = vmatprep.mubr.bf16.mxu0 0
      %1659 = vmatmul.mubr.bf16.gmra.mrb[0].mxu0 %v1624
      %v1660 = vpop.f32.mrb[0].mxu0
      %v1661 = vadd.f32 %v1557, %v1660
      %v1662 = vpop.f32.mrb[0].mxu0
      %v1663 = vpop.f32.mrb[0].mxu0
      %v1664 = vpop.f32.mrb[0].mxu0
      %1665 = vdwg.mxu0
      %v1666 = vmax.f32 %v1661, 0.0
      %v1667 = vpack.c.bf16 %v1666, %v1666
      %v1669 = vsel %vm1574, %v1667, 0
      %1671 = vmatprep.subr.bf16.mxu0 0
      %1672 = vmatpush1.bf16.msra.mxu0 %v1569
      %1673 = vmatprep.subr.bf16.mxu0 0
      %1674 = vmatpush1.bf16.msra.mxu0 %v1570
      %1675 = vmatprep.subr.bf16.mxu0 0
      %1676 = vmatpush1.bf16.msra.mxu0 %v1579
      %1677 = vmatprep.subr.bf16.mxu0 0
      %1678 = vmatpush1.bf16.msra.mxu0 0
      %1679 = vmatprep.subr.bf16.mxu0 0
      %1680 = vmatpush1.bf16.msra.mxu0 0
      %1681 = vmatprep.subr.bf16.mxu0 0
      %1682 = vmatpush1.bf16.msra.mxu0 0
      %1683 = vmatprep.subr.bf16.mxu0 0
      %1684 = vmatpush1.bf16.msra.mxu0 0
      %1685 = vmatprep.subr.bf16.mxu0 0
      %1686 = vmatpush1.bf16.msra.mxu0 0
      %1687 = vmatprep.subr.bf16.mxu0 0
      %1688 = vmatpush1.bf16.msra.mxu0 0
      %1689 = vmatprep.subr.bf16.mxu0 0
      %1690 = vmatpush1.bf16.msra.mxu0 0
      %1691 = vmatprep.subr.bf16.mxu0 0
      %1692 = vmatpush1.bf16.msra.mxu0 0
      %1693 = vmatprep.subr.bf16.mxu0 0
      %1694 = vmatpush1.bf16.msra.mxu0 0
      %1695 = vmatprep.subr.bf16.mxu0 0
      %1696 = vmatpush1.bf16.msra.mxu0 0
      %1697 = vmatprep.subr.bf16.mxu0 0
      %1698 = vmatpush1.bf16.msra.mxu0 0
      %1699 = vmatprep.subr.bf16.mxu0 0
      %1700 = vmatpush1.bf16.msra.mxu0 0
      %1701 = vmatprep.subr.bf16.mxu0 0
      %1702 = vmatpush1.bf16.msra.mxu0 0
      %1703 = vmatprep.mubr.bf16.mxu0 0
      %1704 = vmatmul.mubr.bf16.gmra.mrb[0].mxu0 %v1669
      %v1705 = vpop.f32.mrb[0].mxu0
      %v1706 = vadd.f32 %v1557, %v1705
      %v1707 = vpop.f32.mrb[0].mxu0
      %v1708 = vpop.f32.mrb[0].mxu0
      %v1709 = vpop.f32.mrb[0].mxu0
      %1710 = vdwg.mxu0
      %v1711 = vmax.f32 %v1706, 0.0
      %v1712 = vpack.c.bf16 %v1711, %v1711
      %v1713 = vld [vmem:[%s12] sm:$0xf]
      %v1714 = vld [vmem:[%s12 + $0x4] sm:$0xf]
      %v1715 = vld [vmem:[%s12 + $0x8] sm:$0xf]
      %v1716 = vld [vmem:[%s12 + $0xc] sm:$0xf]
      %v1717 = vld [vmem:[%s12 + $0x10] sm:$0xf]
      %v1718 = vld [vmem:[%s13] sm:$0x1]
      %v1720 = vlaneseq
      %v1721 = vshrl.u32 %v1720, 7
      %v1722 = vsub.s32 0, %v1721
      %v1723 = vrot.slane %v1718, %v1722
      %v1730 = vunpack.c.l.b16 %v1713
      %v1731 = vunpack.c.l.b16 %v1714
      %v1732 = vunpack.c.l.b16 %v1715
      %v1733 = vunpack.c.l.b16 %v1716
      %v1734 = vunpack.c.l.b16 %v1717
      %v1735 = vpack.c.b16 %v1731, %v1730
      %v1736 = vpack.c.b16 %v1733, %v1732
      %v1737 = vpack.c.b16 %v1734, %v1734
      %v1741 = vsel %vm1574, %v1712, 0
      %v1744 = vsel %vm1344, %v1737, 0
      %1746 = vmatprep.subr.bf16.mxu0 0
      %1747 = vmatpush1.bf16.msra.mxu0 %v1735
      %1748 = vmatprep.subr.bf16.mxu0 0
      %1749 = vmatpush1.bf16.msra.mxu0 %v1736
      %1750 = vmatprep.subr.bf16.mxu0 0
      %1751 = vmatpush1.bf16.msra.mxu0 %v1744
      %1752 = vmatprep.subr.bf16.mxu0 0
      %1753 = vmatpush1.bf16.msra.mxu0 0
      %1754 = vmatprep.subr.bf16.mxu0 0
      %1755 = vmatpush1.bf16.msra.mxu0 0
      %1756 = vmatprep.subr.bf16.mxu0 0
      %1757 = vmatpush1.bf16.msra.mxu0 0
      %1758 = vmatprep.subr.bf16.mxu0 0
      %1759 = vmatpush1.bf16.msra.mxu0 0
      %1760 = vmatprep.subr.bf16.mxu0 0
      %1761 = vmatpush1.bf16.msra.mxu0 0
      %1762 = vmatprep.subr.bf16.mxu0 0
      %1763 = vmatpush1.bf16.msra.mxu0 0
      %1764 = vmatprep.subr.bf16.mxu0 0
      %1765 = vmatpush1.bf16.msra.mxu0 0
      %1766 = vmatprep.subr.bf16.mxu0 0
      %1767 = vmatpush1.bf16.msra.mxu0 0
      %1768 = vmatprep.subr.bf16.mxu0 0
      %1769 = vmatpush1.bf16.msra.mxu0 0
      %1770 = vmatprep.subr.bf16.mxu0 0
      %1771 = vmatpush1.bf16.msra.mxu0 0
      %1772 = vmatprep.subr.bf16.mxu0 0
      %1773 = vmatpush1.bf16.msra.mxu0 0
      %1774 = vmatprep.subr.bf16.mxu0 0
      %1775 = vmatpush1.bf16.msra.mxu0 0
      %1776 = vmatprep.subr.bf16.mxu0 0
      %1777 = vmatpush1.bf16.msra.mxu0 0
      %1778 = vmatprep.mubr.bf16.mxu0 0
      %1779 = vmatmul.mubr.bf16.gmra.mrb[0].mxu0 %v1741
      %v1780 = vpop.f32.mrb[0].mxu0
      %v1781 = vadd.f32 %v1723, %v1780
      %v1782 = vpop.f32.mrb[0].mxu0
      %v1783 = vpop.f32.mrb[0].mxu0
      %v1784 = vpop.f32.mrb[0].mxu0
      %1785 = vdwg.mxu0
      %v1786 = vxor.u32 %v1781, 2147483648
      %v1787 = vmul.f32 %v1786, 1.442695
      %v1788 = vpow.pop %v1787
      %v1789 = vadd.f32 %v1788, 1.0
      %v1790 = vrcp.pop %v1789
      %v1791 = vmul.f32 1.0, %v1790
      %1793 = vrot.lane.b32.xlu0 %v1389, 64
      %v1794 = vpop.permute.xlu0 %1793
      %1797 = vrot.lane.b32.xlu0 %v1398, 64
      %v1798 = vpop.permute.xlu0 %1797
      %1801 = vrot.lane.b32.xlu0 %v1412, 80
      %v1802 = vpop.permute.xlu0 %1801
      %1805 = vrot.lane.b32.xlu0 %v1383, 88
      %v1806 = vpop.permute.xlu0 %1805
      %v1808 = vsel %vm638, %v1791, %v1794
      %v1809 = vsel %vm1340, %v1808, %v1798
      %vm1810 = vcmask 654336
      %v1811 = vsel %vm1810, %v1809, %v1802
      %vm1812 = vcmask 719872
      %v1813 = vsel %vm1812, %v1811, %v1806
      %vm1814 = vcmask 785408
      %v1815 = vsel %vm1814, %v1813, 0.0
      %1816 = vst [vmem:[%s511] sm:$0xff] %v1815
      %p1817 = scmp.lt.s32.totalorder %s26, 1
      %s1818 = scalar_select %p1817, %s26, 1
      %s1819 = smul.addr %s1818, 8
      %s1820 = scalar_lea.vmem %s15, %s1819
      // Predicated region
      $region81: #{td_cvae_forward.1} parent=79 // pred_check
        %p1821 = pneg %p369
      $region82: #{td_cvae_forward.1} parent=79 // pred_check_branch
        %1823 = sbr.rel (%p1821) target = $region84
      $region83: #{td_cvae_forward.1} parent=79 // pred_region
        _
      $region84: #{td_cvae_forward.1} parent=79 // pred_fallthru
        _
    $region80: #{td_cvae_forward.1} parent=5 // pred_fallthru
      _
    %p1824 = scmp.le.s32.totalorder 2, %s21
    // Predicated region
    $region85: #{td_cvae_forward.1} parent=5 // pred_check
      %p1825 = pneg %p1824
    $region86: #{td_cvae_forward.1} parent=5 // pred_check_branch
      %1827 = sbr.rel (%p1825) target = $region88
    $region87: #{td_cvae_forward.1} parent=5 // pred_region
      %s1828 = ssub.s32 %s21, 2
      // Predicated region
      $region89: #{td_cvae_forward.1} parent=87 // pred_check
        %p1829 = pneg %p375
      $region90: #{td_cvae_forward.1} parent=87 // pred_check_branch
        %1831 = sbr.rel (%p1829) target = $region92
      $region91: #{td_cvae_forward.1} parent=87 // pred_region
        %p1832 = scmp.lt.s32.totalorder %s27, 1
        %s1833 = scalar_select %p1832, %s27, 1
        %s1834 = smul.addr %s1833, 8
        %s1835 = scalar_lea.vmem %s15, %s1834
      $region92: #{td_cvae_forward.1} parent=87 // pred_fallthru
        _
    $region88: #{td_cvae_forward.1} parent=5 // pred_fallthru
      _
  $region6: #{td_cvae_forward.1} parent=0 // loop_footer
    %s25 = sadd.s32 1, %s21
  $region7: #{td_cvae_forward.1} parent=0 // loop_footer_branch
    %20 = sbr.rel target = $region3
  $region8: #{td_cvae_forward.1} parent=0 // loop_exit
    _

</llo_original>
